<compile_context>
chip_gen: v6e
topology: v6e:2x2x1
jax: 0.10.0
libtpu: 0.0.40
codegen_flags: <defaults>
</compile_context>

<pallas_src>
import math

import jax
import jax.numpy as jnp
from jax import lax
from jax.experimental import pallas as pl
from jax.experimental.pallas import tpu as pltpu


# ----------------------------------------------------------------------------
# Fused kernel: Mamba branch + 2-layer GAT branch, one invocation, no grid.
# ----------------------------------------------------------------------------
def spatio_temporal_kernel(
    # --- Mamba operands ---------------------------------------------------
    x_ref,         # (B*L, D)        temporal data, batch-major flattened
    bias_bl_ref,   # (B*L, 2*DI+S)   pos[t] @ W_cat + b_cat, tiled over batch
    w_xcat_ref,    # (D, 2*DI+S)     [in_proj | gate_proj | C_proj] weights
    w_b_ref,       # (DI, S)         B_proj weight (bias folded into scan_tab)
    scan_t_ref,    # (B*L, B*L)      batch-blocked lower-triangular 0/1 mask
    scan_tab_ref,  # (B*L, 3S+M)     [a^t | a^-t | a^-t*b_B | row0: b_outfc]
    w_outfc_ref,   # (S, M)          w_out[:S] @ w_fc  (fused out_proj*fc)
    # --- GAT operands -------------------------------------------------------
    gx_ref,        # (N, F0)         node features
    adj_ref,       # (N, N)          adjacency
    w0_ext_ref,    # (F0, H*Fh+H)    [W0 heads | W0_h @ a_src_h columns]
    w1_ext_ref,    # (H*Fh, O+1)     [W1 | W1 @ a1_src]
    gat_a_ref,     # (H+1, H*Fh+H)   rows 0..H-1: block-diag a_dst; row H: a1_dst
    # --- outputs ------------------------------------------------------------
    mamba_out_ref,  # (B*L, M)
    gat_out_ref,    # (N, O)
    *, alpha: float = 0.2):
  f32 = jnp.float32

  # ================================ Mamba =================================
  d_inner = w_b_ref.shape[0]
  d_state = w_b_ref.shape[1]
  m_dim = w_outfc_ref.shape[1]

  # in_proj / gate_proj / C_proj share the LHS -> one fused matmul; the
  # positional-embedding add is already folded into bias_bl (exact: linear).
  proj = (jnp.dot(x_ref[...], w_xcat_ref[...], preferred_element_type=f32)
          + bias_bl_ref[...])                                   # (B*L, 2DI+S)
  x_proj = proj[:, :d_inner]
  gate = jax.nn.sigmoid(proj[:, d_inner:2 * d_inner])
  c_mat = proj[:, 2 * d_inner:2 * d_inner + d_state]            # (B*L, S)
  x_gated = x_proj * gate
  bm_raw = jnp.dot(x_gated, w_b_ref[...], preferred_element_type=f32)  # (B*L, S)

  # Selective scan h[t] = A*h[t-1] + B[t] as ONE masked matmul via rescale:
  #   h = a^t * (T @ (a^{-t} * B))     (T, a^{+/-t}, a^{-t}*b_B precomputed).
  tab = scan_tab_ref[...]
  a_pos = tab[:, :d_state]
  a_neg = tab[:, d_state:2 * d_state]
  bias_neg = tab[:, 2 * d_state:3 * d_state]                    # a^-t * b_B
  b_outfc = tab[0:1, 3 * d_state:3 * d_state + m_dim]           # (1, M)

  b_scaled = bm_raw * a_neg + bias_neg                          # (B*L, S)
  h = a_pos * jnp.dot(scan_t_ref[...], b_scaled, preferred_element_type=f32)
  y = h * c_mat                                                 # (B*L, S)

  # out_proj (restricted to its first S rows; output_expanded is zero beyond
  # them) and mamba_fc fused into one matmul.
  mamba_out_ref[...] = (jnp.dot(y, w_outfc_ref[...], preferred_element_type=f32)
                        + b_outfc)

  # ================================= GAT ==================================
  gx = gx_ref[...]                                              # (N, F0)
  adj = adj_ref[...]                                            # (N, N)
  # Additive mask.  -1e30 instead of -inf: a node with no neighbour gets a
  # finite (uniform) softmax instead of NaN; identical result whenever at
  # least one neighbour exists (exp underflows to exactly 0).
  neg_mask = jnp.where(adj > f32(0.0), f32(0.0), f32(-1e30))

  gat_a = gat_a_ref[...]                                        # (H+1, H*Fh+H)
  w1_ext = w1_ext_ref[...]                                      # (H*Fh, O+1)
  heads = gat_a.shape[0] - 1
  fh = w1_ext.shape[0] // heads
  out_dim = w1_ext.shape[1] - 1

  def attend(xt, e_src_col, e_dst_row):
    # e[i, j] = LeakyReLU(src[i] + dst[j]); masked softmax over j; att @ xt.
    e = e_src_col + e_dst_row                                   # (N, N)
    e = jnp.where(e > f32(0.0), e, f32(alpha) * e)              # LeakyReLU(0.2)
    e = e + neg_mask
    m = jnp.max(e, axis=1, keepdims=True)
    p = jnp.exp(e - m)
    att = p / jnp.sum(p, axis=1, keepdims=True)                 # exact divide
    # TODO(synk): attention dropout + gat_dropout are inference-mode identity.
    return jnp.dot(att, xt, preferred_element_type=f32)

  # Layer 0: one matmul gives all heads' features AND all e_src columns.
  xt_all = jnp.dot(gx, w0_ext_ref[...], preferred_element_type=f32)  # (N, H*Fh+H)
  # All heads' e_dst rows in one block-diagonal push.
  dst_rows = lax.dot_general(gat_a[:heads, :], xt_all,
                             (((1,), (1,)), ((), ())),
                             preferred_element_type=f32)        # (H, N)

  # Layer-1 input fused in: concat_h(relu(y_h)) @ [W1 | W1@a1_src]
  #   == sum_h relu(y_h) @ [W1_h | W1_h@a1_src], so the concat layout (and
  # the separate e_src1 dot) never materialize.
  xt1_ext = None
  for hd in range(heads):
    xt_h = xt_all[:, hd * fh:(hd + 1) * fh]                     # (N, Fh)
    e_src = xt_all[:, heads * fh + hd:heads * fh + hd + 1]      # (N, 1)
    e_dst = dst_rows[hd:hd + 1, :]                              # (1, N)
    y_h = attend(xt_h, e_src, e_dst)
    y_h = jnp.maximum(y_h, f32(0.0))                            # inter-layer ReLU
    part = jnp.dot(y_h, w1_ext[hd * fh:(hd + 1) * fh, :],
                   preferred_element_type=f32)                  # (N, O+1)
    xt1_ext = part if xt1_ext is None else xt1_ext + part

  xt1 = xt1_ext[:, :out_dim]                                    # (N, O)
  e_src1 = xt1_ext[:, out_dim:out_dim + 1]                      # (N, 1)
  a1_dst = gat_a[heads:heads + 1, :out_dim]                     # (1, O)
  e_dst1 = lax.dot_general(a1_dst, xt1, (((1,), (1,)), ((), ())),
                           preferred_element_type=f32)          # (1, N)

  # Layer 1: single head, concat=False (mean over one head == identity),
  # no trailing ReLU.
  gat_out_ref[...] = attend(xt1, e_src1, e_dst1)


# ----------------------------------------------------------------------------
# One-time preparation of parameter-derived kernel operands (off the critical
# path: depends only on params and static shapes).
# ----------------------------------------------------------------------------
def prepare_kernel_operands(params, batch, seq_len):
  f32 = jnp.float32
  d_state = params["w_B"].shape[1]
  m_dim = params["w_fc"].shape[1]
  bl = batch * seq_len

  # Fused [in | gate | C] projection; fold pos-embedding add into its bias.
  w_xcat = jnp.concatenate([params["w_in"], params["w_g"], params["w_C"]], 1)
  b_xcat = jnp.concatenate([params["b_in"], params["b_g"], params["b_C"]], 1)
  pos_l = params["pos"][:seq_len, :]                            # (L, D)
  bias_bl = jnp.tile(pos_l @ w_xcat + b_xcat, (batch, 1))       # (BL, 2DI+S)

  # Scan rescale tables: h = a^t * (T @ (a^{-t} * b)).
  a_disc = jnp.exp(0.01 * jnp.exp(params["a_log"]))             # (1, S)
  t_idx = jnp.tile(jnp.arange(seq_len, dtype=f32), batch)[:, None]   # (BL, 1)
  a_pos = a_disc ** t_idx                                       # (BL, S)
  a_neg = a_disc ** (-t_idx)                                    # (BL, S)
  bias_neg = a_neg * params["b_B"]                              # (BL, S)

  # Fused out_proj @ mamba_fc (no nonlinearity between them).
  w_outfc = params["w_out_s"] @ params["w_fc"]                  # (S, M)
  b_outfc = params["b_out"] @ params["w_fc"] + params["b_fc"]   # (1, M)
  scan_tab = jnp.concatenate(
      [a_pos, a_neg, bias_neg, jnp.broadcast_to(b_outfc, (bl, m_dim))], axis=1)

  # Batch-blocked lower-triangular 0/1 mask (integer index math -> exact).
  r = jnp.arange(bl)
  rb, rt = r // seq_len, r % seq_len
  scan_t = ((rb[:, None] == rb[None, :]) &
            (rt[:, None] >= rt[None, :])).astype(f32)           # (BL, BL)

  # GAT: fold attention vectors into the weight matmuls.
  w0, a0 = params["gat"][0]                                     # (H,F0,Fh),(H,2Fh)
  w1, a1 = params["gat"][1]                                     # (1,H*Fh,O),(1,2O)
  heads, f0, fh = w0.shape
  w1 = w1[0]
  a1 = a1[0]
  out_dim = w1.shape[1]

  w0_cat = w0.transpose(1, 0, 2).reshape(f0, heads * fh)        # (F0, H*Fh)
  v_src = jnp.einsum("hfo,ho->fh", w0, a0[:, :fh])              # (F0, H)
  w0_ext = jnp.concatenate([w0_cat, v_src], axis=1)             # (F0, H*Fh+H)

  a0_dst = a0[:, fh:]                                           # (H, Fh)
  bd = (jnp.eye(heads, dtype=f32)[:, :, None] * a0_dst[None, :, :]
        ).reshape(heads, heads * fh)                            # block-diag dst
  bd = jnp.concatenate([bd, jnp.zeros((heads, heads), f32)], axis=1)
  a1_dst_row = jnp.concatenate(
      [a1[out_dim:][None, :],
       jnp.zeros((1, heads * fh + heads - out_dim), f32)], axis=1)
  gat_a = jnp.concatenate([bd, a1_dst_row], axis=0)             # (H+1, H*Fh+H)

  v1_src = (w1 @ a1[:out_dim])[:, None]                         # (H*Fh, 1)
  w1_ext = jnp.concatenate([w1, v1_src], axis=1)                # (H*Fh, O+1)

  return {
      "bias_bl": bias_bl, "w_xcat": w_xcat, "w_B": params["w_B"],
      "scan_T": scan_t, "scan_tab": scan_tab, "w_outfc": w_outfc,
      "w0_ext": w0_ext, "w1_ext": w1_ext, "gat_a": gat_a,
  }


# ----------------------------------------------------------------------------
# Wrapper: one fused, gridless pallas_call for the whole forward pass.
# ----------------------------------------------------------------------------
@jax.jit
def spatio_temporal_forward(temporal, graph_x, adj, ops):
  b, l, _ = temporal.shape
  m_dim = ops["w_outfc"].shape[1]
  n = graph_x.shape[0]
  out_dim = ops["w1_ext"].shape[1] - 1

  x_flat = temporal.reshape(b * l, -1)                          # batch-major rows
  args = (x_flat, ops["bias_bl"], ops["w_xcat"], ops["w_B"],
          ops["scan_T"], ops["scan_tab"], ops["w_outfc"],
          graph_x, adj, ops["w0_ext"], ops["w1_ext"], ops["gat_a"])

  vmem = lambda: pl.BlockSpec(memory_space=pltpu.MemorySpace.VMEM)
  mamba_flat, gat_out = pl.pallas_call(
      spatio_temporal_kernel,
      out_shape=(jax.ShapeDtypeStruct((b * l, m_dim), jnp.float32),
                 jax.ShapeDtypeStruct((n, out_dim), jnp.float32)),
      in_specs=[vmem() for _ in args],
      out_specs=(vmem(), vmem()),
  )(*args)

  return mamba_flat.reshape(b, l, m_dim), gat_out


# ----------------------------------------------------------------------------
# Pure-JAX reference (numerical sanity check against the PyTorch semantics)
# ----------------------------------------------------------------------------
def reference_forward(temporal, graph_x, adj, p):
  b, l, d = temporal.shape
  x = temporal + p["pos"][None, :l, :]
  xp = x @ p["w_in"] + p["b_in"]
  gate = jax.nn.sigmoid(x @ p["w_g"] + p["b_g"])
  xg = xp * gate
  bm = xg @ p["w_B"] + p["b_B"]
  cm = x @ p["w_C"] + p["b_C"]
  a_disc = jnp.exp(0.01 * jnp.exp(p["a_log"]))
  s = a_disc.shape[1]
  h = jnp.zeros((b, s), jnp.float32)
  ys = []
  for t in range(l):
    h = a_disc * h + bm[:, t, :]
    ys.append(h * cm[:, t, :])
  y = jnp.stack(ys, axis=1)
  mam = y @ p["w_out_s"] + p["b_out"]
  mf = mam @ p["w_fc"] + p["b_fc"]

  xg_ = graph_x
  n_layers = len(p["gat"])
  for i, (w, a) in enumerate(p["gat"]):
    heads, fin, fout = w.shape
    xt = jnp.einsum("nf,hfo->hno", xg_, w)
    e = (jnp.einsum("hno,ho->hn", xt, a[:, :fout])[:, :, None]
         + jnp.einsum("hno,ho->hn", xt, a[:, fout:])[:, None, :])
    e = jnp.where(e > 0, e, 0.2 * e)
    e = jnp.where(adj[None] > 0, e, -jnp.inf)
    att = jax.nn.softmax(e, axis=2)
    out = jnp.einsum("hij,hjo->hio", att, xt)
    if i < n_layers - 1:
      out = jnp.maximum(out, 0.0)
      xg_ = out.transpose(1, 0, 2).reshape(graph_x.shape[0], heads * fout)
    else:
      xg_ = out.mean(axis=0)
  return mf, xg_


# ----------------------------------------------------------------------------
# Deterministic parameter init
# ----------------------------------------------------------------------------
def _unif(key, shape, bound):
  return jax.random.uniform(key, shape, jnp.float32, -bound, bound)


def init_params(key, d_model, l_max, mamba_dim, d_state, expand,
                node_dim, hid_dim, heads, out_dim):
  d_inner = d_model * expand
  # The out_proj row-slice trick (output_expanded is zero beyond d_state cols)
  # requires d_state <= d_inner.
  assert d_state <= d_inner, "kernel assumes d_state <= d_inner"

  ks = jax.random.split(key, 16)

  def lin(k, i, o):
    bound = 1.0 / math.sqrt(i)
    return (_unif(k, (i, o), bound),
            _unif(jax.random.fold_in(k, 1), (1, o), bound))

  w_in, b_in = lin(ks[0], d_model, d_inner)
  w_g, b_g = lin(ks[1], d_model, d_inner)
  w_B, b_B = lin(ks[2], d_inner, d_state)
  w_C, b_C = lin(ks[3], d_model, d_state)
  w_out, b_out = lin(ks[4], d_inner, d_model)
  w_fc, b_fc = lin(ks[5], d_model, mamba_dim)
  a_log = jnp.linspace(math.log(0.001), math.log(0.1), d_state,
                       dtype=jnp.float32).reshape(1, d_state)
  pos = jax.random.normal(ks[6], (l_max, d_model), jnp.float32)

  def xavier(k, shape, fan_in, fan_out):
    return _unif(k, shape, math.sqrt(6.0 / (fan_in + fan_out)))

  # GAT layer 0: node_dim -> hid_dim, `heads` heads, concat.
  w0 = xavier(ks[7], (heads, node_dim, hid_dim), node_dim, hid_dim)
  a0 = xavier(ks[8], (heads, 2 * hid_dim), 2 * hid_dim, 1)
  # GAT last layer: hid_dim*heads -> out_dim, 1 head, mean.
  w1 = xavier(ks[9], (1, hid_dim * heads, out_dim), hid_dim * heads, out_dim)
  a1 = xavier(ks[10], (1, 2 * out_dim), 2 * out_dim, 1)

  return {
      "w_in": w_in, "b_in": b_in, "w_g": w_g, "b_g": b_g,
      "w_B": w_B, "b_B": b_B, "w_C": w_C, "b_C": b_C,
      "a_log": a_log, "pos": pos,
      "w_out_s": w_out[:d_state, :], "b_out": b_out,
      "w_fc": w_fc, "b_fc": b_fc,
      "gat": [(w0, a0), (w1, a1)],
  }


if __name__ == "__main__":
  # Small shapes consistent with the module.
  B, L, D = 2, 8, 16            # num_cities, seq_len, temporal_input_dim
  MAMBA_DIM = 32
  D_STATE, EXPAND = 16, 2
  N, NODE_DIM, HID, HEADS, OUT_DIM = 8, 16, 8, 4, 8   # num_gat_layers = 2

  key = jax.random.PRNGKey(0)
  k_param, k_temporal, k_graph = jax.random.split(key, 3)
  params = init_params(k_param, D, 100, MAMBA_DIM, D_STATE, EXPAND,
                       NODE_DIM, HID, HEADS, OUT_DIM)

  temporal = jax.random.normal(k_temporal, (B, L, D), jnp.float32)
  graph_x = jax.random.normal(k_graph, (N, NODE_DIM), jnp.float32)
  # ring graph with self-loops so every node has >= 1 neighbour
  adj = (jnp.eye(N) + jnp.eye(N, k=1) + jnp.eye(N, k=-1)
         + jnp.eye(N, k=N - 1) + jnp.eye(N, k=-(N - 1))).astype(jnp.float32)

  # One-time operand preparation (off the forward critical path).
  ops = prepare_kernel_operands(params, B, L)
  ops = jax.tree_util.tree_map(jnp.asarray, ops)

  mamba_feat, gat_feat = spatio_temporal_forward(temporal, graph_x, adj, ops)
  jax.block_until_ready((mamba_feat, gat_feat))

  mf_ref, gf_ref = reference_forward(temporal, graph_x, adj, params)
  assert mamba_feat.shape == (B, L, MAMBA_DIM)
  assert gat_feat.shape == (N, OUT_DIM)
  assert jnp.allclose(mamba_feat, mf_ref, atol=2e-3, rtol=2e-3)
  assert jnp.allclose(gat_feat, gf_ref, atol=2e-3, rtol=2e-3)

  print("KERNEL_OK")
</pallas_src>

<mosaic_0001>
module attributes {stable_mosaic.version = 11 : i64} {
  func.func @spatio_temporal_kernel(%arg0: memref<16x16xf32, #tpu.memory_space<vmem>>, %arg1: memref<16x80xf32, #tpu.memory_space<vmem>>, %arg2: memref<16x80xf32, #tpu.memory_space<vmem>>, %arg3: memref<32x16xf32, #tpu.memory_space<vmem>>, %arg4: memref<16x16xf32, #tpu.memory_space<vmem>>, %arg5: memref<16x80xf32, #tpu.memory_space<vmem>>, %arg6: memref<16x32xf32, #tpu.memory_space<vmem>>, %arg7: memref<8x16xf32, #tpu.memory_space<vmem>>, %arg8: memref<8x8xf32, #tpu.memory_space<vmem>>, %arg9: memref<16x36xf32, #tpu.memory_space<vmem>>, %arg10: memref<32x9xf32, #tpu.memory_space<vmem>>, %arg11: memref<5x36xf32, #tpu.memory_space<vmem>>, %arg12: memref<16x32xf32, #tpu.memory_space<vmem>>, %arg13: memref<8x8xf32, #tpu.memory_space<vmem>>) attributes {dimension_semantics = [], scalar_prefetch = 0 : i64, scratch_operands = 0 : i64, tpu.core_type = #tpu.core_type<tc>} {
    %c0 = arith.constant 0 : index
    %c0_0 = arith.constant 0 : index
    %0 = vector.load %arg0[%c0, %c0_0] : memref<16x16xf32, #tpu.memory_space<vmem>>, vector<16x16xf32>
    %c0_1 = arith.constant 0 : index
    %c0_2 = arith.constant 0 : index
    %1 = vector.load %arg2[%c0_1, %c0_2] : memref<16x80xf32, #tpu.memory_space<vmem>>, vector<16x80xf32>
    %cst = arith.constant dense<0.000000e+00> : vector<16x80xf32>
    %2 = tpu.matmul %0, %1, %cst {dimension_numbers = #tpu.dot_dimension_numbers<[1], [0], [0], [1], [0, 0, 1, 1], [], []>} : vector<16x16xf32>, vector<16x80xf32>, vector<16x80xf32> -> vector<16x80xf32>
    %c0_3 = arith.constant 0 : index
    %c0_4 = arith.constant 0 : index
    %3 = vector.load %arg1[%c0_3, %c0_4] : memref<16x80xf32, #tpu.memory_space<vmem>>, vector<16x80xf32>
    %4 = arith.addf %2, %3 : vector<16x80xf32>
    %5 = vector.extract_strided_slice %4 {offsets = [0, 0], sizes = [16, 32], strides = [1, 1]} : vector<16x80xf32> to vector<16x32xf32>
    %6 = vector.extract_strided_slice %4 {offsets = [0, 32], sizes = [16, 32], strides = [1, 1]} : vector<16x80xf32> to vector<16x32xf32>
    %7 = arith.negf %6 : vector<16x32xf32>
    %8 = math.exp %7 : vector<16x32xf32>
    %cst_5 = arith.constant 1.000000e+00 : f32
    %9 = vector.broadcast %cst_5 : f32 to vector<16x32xf32>
    %10 = arith.addf %9, %8 : vector<16x32xf32>
    %11 = arith.divf %9, %10 : vector<16x32xf32>
    %12 = vector.extract_strided_slice %4 {offsets = [0, 64], sizes = [16, 16], strides = [1, 1]} : vector<16x80xf32> to vector<16x16xf32>
    %13 = arith.mulf %5, %11 : vector<16x32xf32>
    %c0_6 = arith.constant 0 : index
    %c0_7 = arith.constant 0 : index
    %14 = vector.load %arg3[%c0_6, %c0_7] : memref<32x16xf32, #tpu.memory_space<vmem>>, vector<32x16xf32>
    %cst_8 = arith.constant dense<0.000000e+00> : vector<16x16xf32>
    %15 = tpu.matmul %13, %14, %cst_8 {dimension_numbers = #tpu.dot_dimension_numbers<[1], [0], [0], [1], [0, 0, 1, 1], [], []>} : vector<16x32xf32>, vector<32x16xf32>, vector<16x16xf32> -> vector<16x16xf32>
    %c0_9 = arith.constant 0 : index
    %c0_10 = arith.constant 0 : index
    %16 = vector.load %arg5[%c0_9, %c0_10] : memref<16x80xf32, #tpu.memory_space<vmem>>, vector<16x80xf32>
    %17 = vector.extract_strided_slice %16 {offsets = [0, 0], sizes = [16, 16], strides = [1, 1]} : vector<16x80xf32> to vector<16x16xf32>
    %18 = vector.extract_strided_slice %16 {offsets = [0, 16], sizes = [16, 16], strides = [1, 1]} : vector<16x80xf32> to vector<16x16xf32>
    %19 = vector.extract_strided_slice %16 {offsets = [0, 32], sizes = [16, 16], strides = [1, 1]} : vector<16x80xf32> to vector<16x16xf32>
    %20 = vector.extract_strided_slice %16 {offsets = [0, 48], sizes = [1, 32], strides = [1, 1]} : vector<16x80xf32> to vector<1x32xf32>
    %21 = arith.mulf %15, %18 : vector<16x16xf32>
    %22 = arith.addf %21, %19 : vector<16x16xf32>
    %c0_11 = arith.constant 0 : index
    %c0_12 = arith.constant 0 : index
    %23 = vector.load %arg4[%c0_11, %c0_12] : memref<16x16xf32, #tpu.memory_space<vmem>>, vector<16x16xf32>
    %cst_13 = arith.constant dense<0.000000e+00> : vector<16x16xf32>
    %24 = tpu.matmul %23, %22, %cst_13 {dimension_numbers = #tpu.dot_dimension_numbers<[1], [0], [0], [1], [0, 0, 1, 1], [], []>} : vector<16x16xf32>, vector<16x16xf32>, vector<16x16xf32> -> vector<16x16xf32>
    %25 = arith.mulf %17, %24 : vector<16x16xf32>
    %26 = arith.mulf %25, %12 : vector<16x16xf32>
    %c0_14 = arith.constant 0 : index
    %c0_15 = arith.constant 0 : index
    %27 = vector.load %arg6[%c0_14, %c0_15] : memref<16x32xf32, #tpu.memory_space<vmem>>, vector<16x32xf32>
    %cst_16 = arith.constant dense<0.000000e+00> : vector<16x32xf32>
    %28 = tpu.matmul %26, %27, %cst_16 {dimension_numbers = #tpu.dot_dimension_numbers<[1], [0], [0], [1], [0, 0, 1, 1], [], []>} : vector<16x16xf32>, vector<16x32xf32>, vector<16x32xf32> -> vector<16x32xf32>
    %29 = vector.broadcast %20 : vector<1x32xf32> to vector<16x32xf32>
    %30 = arith.addf %28, %29 : vector<16x32xf32>
    %c0_17 = arith.constant 0 : index
    %c0_18 = arith.constant 0 : index
    %31 = vector.load %arg12[%c0_17, %c0_18] : memref<16x32xf32, #tpu.memory_space<vmem>>, vector<16x32xf32>
    tpu.vector_store %arg12[%c0_17, %c0_18], %30 {strides = array<i32>} : memref<16x32xf32, #tpu.memory_space<vmem>>, vector<16x32xf32>,
    %c0_19 = arith.constant 0 : index
    %c0_20 = arith.constant 0 : index
    %32 = vector.load %arg7[%c0_19, %c0_20] : memref<8x16xf32, #tpu.memory_space<vmem>>, vector<8x16xf32>
    %c0_21 = arith.constant 0 : index
    %c0_22 = arith.constant 0 : index
    %33 = vector.load %arg8[%c0_21, %c0_22] : memref<8x8xf32, #tpu.memory_space<vmem>>, vector<8x8xf32>
    %cst_23 = arith.constant 0.000000e+00 : f32
    %34 = vector.broadcast %cst_23 : f32 to vector<8x8xf32>
    %35 = arith.cmpf ogt, %33, %34 : vector<8x8xf32>
    %cst_24 = arith.constant 0.000000e+00 : f32
    %cst_25 = arith.constant -1.000000e+30 : f32
    %36 = vector.broadcast %cst_24 : f32 to vector<8x8xf32>
    %37 = vector.broadcast %cst_25 : f32 to vector<8x8xf32>
    %38 = arith.select %35, %36, %37 : vector<8x8xi1>, vector<8x8xf32>
    %c0_26 = arith.constant 0 : index
    %c0_27 = arith.constant 0 : index
    %39 = vector.load %arg11[%c0_26, %c0_27] : memref<5x36xf32, #tpu.memory_space<vmem>>, vector<5x36xf32>
    %c0_28 = arith.constant 0 : index
    %c0_29 = arith.constant 0 : index
    %40 = vector.load %arg10[%c0_28, %c0_29] : memref<32x9xf32, #tpu.memory_space<vmem>>, vector<32x9xf32>
    %c0_30 = arith.constant 0 : index
    %c0_31 = arith.constant 0 : index
    %41 = vector.load %arg9[%c0_30, %c0_31] : memref<16x36xf32, #tpu.memory_space<vmem>>, vector<16x36xf32>
    %cst_32 = arith.constant dense<0.000000e+00> : vector<8x36xf32>
    %42 = tpu.matmul %32, %41, %cst_32 {dimension_numbers = #tpu.dot_dimension_numbers<[1], [0], [0], [1], [0, 0, 1, 1], [], []>} : vector<8x16xf32>, vector<16x36xf32>, vector<8x36xf32> -> vector<8x36xf32>
    %43 = vector.extract_strided_slice %39 {offsets = [0, 0], sizes = [4, 36], strides = [1, 1]} : vector<5x36xf32> to vector<4x36xf32>
    %cst_33 = arith.constant dense<0.000000e+00> : vector<4x8xf32>
    %44 = tpu.matmul %43, %42, %cst_33 {dimension_numbers = #tpu.dot_dimension_numbers<[1], [1], [0], [0], [0, 0, 1, 0], [], []>} : vector<4x36xf32>, vector<8x36xf32>, vector<4x8xf32> -> vector<4x8xf32>
    %45 = vector.extract_strided_slice %42 {offsets = [0, 0], sizes = [8, 8], strides = [1, 1]} : vector<8x36xf32> to vector<8x8xf32>
    %46 = vector.extract_strided_slice %42 {offsets = [0, 32], sizes = [8, 1], strides = [1, 1]} : vector<8x36xf32> to vector<8x1xf32>
    %47 = vector.extract_strided_slice %44 {offsets = [0, 0], sizes = [1, 8], strides = [1, 1]} : vector<4x8xf32> to vector<1x8xf32>
    %48 = vector.broadcast %46 : vector<8x1xf32> to vector<8x8xf32>
    %49 = vector.broadcast %47 : vector<1x8xf32> to vector<8x8xf32>
    %50 = arith.addf %48, %49 : vector<8x8xf32>
    %cst_34 = arith.constant 0.000000e+00 : f32
    %51 = vector.broadcast %cst_34 : f32 to vector<8x8xf32>
    %52 = arith.cmpf ogt, %50, %51 : vector<8x8xf32>
    %cst_35 = arith.constant 2.000000e-01 : f32
    %53 = vector.broadcast %cst_35 : f32 to vector<8x8xf32>
    %54 = arith.mulf %53, %50 : vector<8x8xf32>
    %55 = arith.select %52, %50, %54 : vector<8x8xi1>, vector<8x8xf32>
    %56 = arith.addf %55, %38 : vector<8x8xf32>
    %cst_36 = arith.constant dense<0xFF800000> : vector<8xf32>
    %57 = vector.multi_reduction <maximumf>, %56, %cst_36 [1] : vector<8x8xf32> to vector<8xf32>
    %58 = vector.shape_cast %57 : vector<8xf32> to vector<8x1xf32>
    %59 = vector.broadcast %58 : vector<8x1xf32> to vector<8x8xf32>
    %60 = arith.subf %56, %59 : vector<8x8xf32>
    %61 = math.exp %60 : vector<8x8xf32>
    %cst_37 = arith.constant dense<0.000000e+00> : vector<8xf32>
    %62 = vector.multi_reduction <add>, %61, %cst_37 [1] : vector<8x8xf32> to vector<8xf32>
    %63 = vector.shape_cast %62 : vector<8xf32> to vector<8x1xf32>
    %64 = vector.broadcast %63 : vector<8x1xf32> to vector<8x8xf32>
    %65 = arith.divf %61, %64 : vector<8x8xf32>
    %cst_38 = arith.constant dense<0.000000e+00> : vector<8x8xf32>
    %66 = tpu.matmul %65, %45, %cst_38 {dimension_numbers = #tpu.dot_dimension_numbers<[1], [0], [0], [1], [0, 0, 1, 1], [], []>} : vector<8x8xf32>, vector<8x8xf32>, vector<8x8xf32> -> vector<8x8xf32>
    %cst_39 = arith.constant 0.000000e+00 : f32
    %67 = vector.broadcast %cst_39 : f32 to vector<8x8xf32>
    %68 = arith.maximumf %66, %67 : vector<8x8xf32>
    %69 = vector.extract_strided_slice %40 {offsets = [0, 0], sizes = [8, 9], strides = [1, 1]} : vector<32x9xf32> to vector<8x9xf32>
    %cst_40 = arith.constant dense<0.000000e+00> : vector<8x9xf32>
    %70 = tpu.matmul %68, %69, %cst_40 {dimension_numbers = #tpu.dot_dimension_numbers<[1], [0], [0], [1], [0, 0, 1, 1], [], []>} : vector<8x8xf32>, vector<8x9xf32>, vector<8x9xf32> -> vector<8x9xf32>
    %71 = vector.extract_strided_slice %42 {offsets = [0, 8], sizes = [8, 8], strides = [1, 1]} : vector<8x36xf32> to vector<8x8xf32>
    %72 = vector.extract_strided_slice %42 {offsets = [0, 33], sizes = [8, 1], strides = [1, 1]} : vector<8x36xf32> to vector<8x1xf32>
    %73 = vector.extract_strided_slice %44 {offsets = [1, 0], sizes = [1, 8], strides = [1, 1]} : vector<4x8xf32> to vector<1x8xf32>
    %74 = vector.broadcast %72 : vector<8x1xf32> to vector<8x8xf32>
    %75 = vector.broadcast %73 : vector<1x8xf32> to vector<8x8xf32>
    %76 = arith.addf %74, %75 : vector<8x8xf32>
    %cst_41 = arith.constant 0.000000e+00 : f32
    %77 = vector.broadcast %cst_41 : f32 to vector<8x8xf32>
    %78 = arith.cmpf ogt, %76, %77 : vector<8x8xf32>
    %cst_42 = arith.constant 2.000000e-01 : f32
    %79 = vector.broadcast %cst_42 : f32 to vector<8x8xf32>
    %80 = arith.mulf %79, %76 : vector<8x8xf32>
    %81 = arith.select %78, %76, %80 : vector<8x8xi1>, vector<8x8xf32>
    %82 = arith.addf %81, %38 : vector<8x8xf32>
    %cst_43 = arith.constant dense<0xFF800000> : vector<8xf32>
    %83 = vector.multi_reduction <maximumf>, %82, %cst_43 [1] : vector<8x8xf32> to vector<8xf32>
    %84 = vector.shape_cast %83 : vector<8xf32> to vector<8x1xf32>
    %85 = vector.broadcast %84 : vector<8x1xf32> to vector<8x8xf32>
    %86 = arith.subf %82, %85 : vector<8x8xf32>
    %87 = math.exp %86 : vector<8x8xf32>
    %cst_44 = arith.constant dense<0.000000e+00> : vector<8xf32>
    %88 = vector.multi_reduction <add>, %87, %cst_44 [1] : vector<8x8xf32> to vector<8xf32>
    %89 = vector.shape_cast %88 : vector<8xf32> to vector<8x1xf32>
    %90 = vector.broadcast %89 : vector<8x1xf32> to vector<8x8xf32>
    %91 = arith.divf %87, %90 : vector<8x8xf32>
    %cst_45 = arith.constant dense<0.000000e+00> : vector<8x8xf32>
    %92 = tpu.matmul %91, %71, %cst_45 {dimension_numbers = #tpu.dot_dimension_numbers<[1], [0], [0], [1], [0, 0, 1, 1], [], []>} : vector<8x8xf32>, vector<8x8xf32>, vector<8x8xf32> -> vector<8x8xf32>
    %cst_46 = arith.constant 0.000000e+00 : f32
    %93 = vector.broadcast %cst_46 : f32 to vector<8x8xf32>
    %94 = arith.maximumf %92, %93 : vector<8x8xf32>
    %95 = vector.extract_strided_slice %40 {offsets = [8, 0], sizes = [8, 9], strides = [1, 1]} : vector<32x9xf32> to vector<8x9xf32>
    %cst_47 = arith.constant dense<0.000000e+00> : vector<8x9xf32>
    %96 = tpu.matmul %94, %95, %cst_47 {dimension_numbers = #tpu.dot_dimension_numbers<[1], [0], [0], [1], [0, 0, 1, 1], [], []>} : vector<8x8xf32>, vector<8x9xf32>, vector<8x9xf32> -> vector<8x9xf32>
    %97 = arith.addf %70, %96 : vector<8x9xf32>
    %98 = vector.extract_strided_slice %42 {offsets = [0, 16], sizes = [8, 8], strides = [1, 1]} : vector<8x36xf32> to vector<8x8xf32>
    %99 = vector.extract_strided_slice %42 {offsets = [0, 34], sizes = [8, 1], strides = [1, 1]} : vector<8x36xf32> to vector<8x1xf32>
    %100 = vector.extract_strided_slice %44 {offsets = [2, 0], sizes = [1, 8], strides = [1, 1]} : vector<4x8xf32> to vector<1x8xf32>
    %101 = vector.broadcast %99 : vector<8x1xf32> to vector<8x8xf32>
    %102 = vector.broadcast %100 : vector<1x8xf32> to vector<8x8xf32>
    %103 = arith.addf %101, %102 : vector<8x8xf32>
    %cst_48 = arith.constant 0.000000e+00 : f32
    %104 = vector.broadcast %cst_48 : f32 to vector<8x8xf32>
    %105 = arith.cmpf ogt, %103, %104 : vector<8x8xf32>
    %cst_49 = arith.constant 2.000000e-01 : f32
    %106 = vector.broadcast %cst_49 : f32 to vector<8x8xf32>
    %107 = arith.mulf %106, %103 : vector<8x8xf32>
    %108 = arith.select %105, %103, %107 : vector<8x8xi1>, vector<8x8xf32>
    %109 = arith.addf %108, %38 : vector<8x8xf32>
    %cst_50 = arith.constant dense<0xFF800000> : vector<8xf32>
    %110 = vector.multi_reduction <maximumf>, %109, %cst_50 [1] : vector<8x8xf32> to vector<8xf32>
    %111 = vector.shape_cast %110 : vector<8xf32> to vector<8x1xf32>
    %112 = vector.broadcast %111 : vector<8x1xf32> to vector<8x8xf32>
    %113 = arith.subf %109, %112 : vector<8x8xf32>
    %114 = math.exp %113 : vector<8x8xf32>
    %cst_51 = arith.constant dense<0.000000e+00> : vector<8xf32>
    %115 = vector.multi_reduction <add>, %114, %cst_51 [1] : vector<8x8xf32> to vector<8xf32>
    %116 = vector.shape_cast %115 : vector<8xf32> to vector<8x1xf32>
    %117 = vector.broadcast %116 : vector<8x1xf32> to vector<8x8xf32>
    %118 = arith.divf %114, %117 : vector<8x8xf32>
    %cst_52 = arith.constant dense<0.000000e+00> : vector<8x8xf32>
    %119 = tpu.matmul %118, %98, %cst_52 {dimension_numbers = #tpu.dot_dimension_numbers<[1], [0], [0], [1], [0, 0, 1, 1], [], []>} : vector<8x8xf32>, vector<8x8xf32>, vector<8x8xf32> -> vector<8x8xf32>
    %cst_53 = arith.constant 0.000000e+00 : f32
    %120 = vector.broadcast %cst_53 : f32 to vector<8x8xf32>
    %121 = arith.maximumf %119, %120 : vector<8x8xf32>
    %122 = vector.extract_strided_slice %40 {offsets = [16, 0], sizes = [8, 9], strides = [1, 1]} : vector<32x9xf32> to vector<8x9xf32>
    %cst_54 = arith.constant dense<0.000000e+00> : vector<8x9xf32>
    %123 = tpu.matmul %121, %122, %cst_54 {dimension_numbers = #tpu.dot_dimension_numbers<[1], [0], [0], [1], [0, 0, 1, 1], [], []>} : vector<8x8xf32>, vector<8x9xf32>, vector<8x9xf32> -> vector<8x9xf32>
    %124 = arith.addf %97, %123 : vector<8x9xf32>
    %125 = vector.extract_strided_slice %42 {offsets = [0, 24], sizes = [8, 8], strides = [1, 1]} : vector<8x36xf32> to vector<8x8xf32>
    %126 = vector.extract_strided_slice %42 {offsets = [0, 35], sizes = [8, 1], strides = [1, 1]} : vector<8x36xf32> to vector<8x1xf32>
    %127 = vector.extract_strided_slice %44 {offsets = [3, 0], sizes = [1, 8], strides = [1, 1]} : vector<4x8xf32> to vector<1x8xf32>
    %128 = vector.broadcast %126 : vector<8x1xf32> to vector<8x8xf32>
    %129 = vector.broadcast %127 : vector<1x8xf32> to vector<8x8xf32>
    %130 = arith.addf %128, %129 : vector<8x8xf32>
    %cst_55 = arith.constant 0.000000e+00 : f32
    %131 = vector.broadcast %cst_55 : f32 to vector<8x8xf32>
    %132 = arith.cmpf ogt, %130, %131 : vector<8x8xf32>
    %cst_56 = arith.constant 2.000000e-01 : f32
    %133 = vector.broadcast %cst_56 : f32 to vector<8x8xf32>
    %134 = arith.mulf %133, %130 : vector<8x8xf32>
    %135 = arith.select %132, %130, %134 : vector<8x8xi1>, vector<8x8xf32>
    %136 = arith.addf %135, %38 : vector<8x8xf32>
    %cst_57 = arith.constant dense<0xFF800000> : vector<8xf32>
    %137 = vector.multi_reduction <maximumf>, %136, %cst_57 [1] : vector<8x8xf32> to vector<8xf32>
    %138 = vector.shape_cast %137 : vector<8xf32> to vector<8x1xf32>
    %139 = vector.broadcast %138 : vector<8x1xf32> to vector<8x8xf32>
    %140 = arith.subf %136, %139 : vector<8x8xf32>
    %141 = math.exp %140 : vector<8x8xf32>
    %cst_58 = arith.constant dense<0.000000e+00> : vector<8xf32>
    %142 = vector.multi_reduction <add>, %141, %cst_58 [1] : vector<8x8xf32> to vector<8xf32>
    %143 = vector.shape_cast %142 : vector<8xf32> to vector<8x1xf32>
    %144 = vector.broadcast %143 : vector<8x1xf32> to vector<8x8xf32>
    %145 = arith.divf %141, %144 : vector<8x8xf32>
    %cst_59 = arith.constant dense<0.000000e+00> : vector<8x8xf32>
    %146 = tpu.matmul %145, %125, %cst_59 {dimension_numbers = #tpu.dot_dimension_numbers<[1], [0], [0], [1], [0, 0, 1, 1], [], []>} : vector<8x8xf32>, vector<8x8xf32>, vector<8x8xf32> -> vector<8x8xf32>
    %cst_60 = arith.constant 0.000000e+00 : f32
    %147 = vector.broadcast %cst_60 : f32 to vector<8x8xf32>
    %148 = arith.maximumf %146, %147 : vector<8x8xf32>
    %149 = vector.extract_strided_slice %40 {offsets = [24, 0], sizes = [8, 9], strides = [1, 1]} : vector<32x9xf32> to vector<8x9xf32>
    %cst_61 = arith.constant dense<0.000000e+00> : vector<8x9xf32>
    %150 = tpu.matmul %148, %149, %cst_61 {dimension_numbers = #tpu.dot_dimension_numbers<[1], [0], [0], [1], [0, 0, 1, 1], [], []>} : vector<8x8xf32>, vector<8x9xf32>, vector<8x9xf32> -> vector<8x9xf32>
    %151 = arith.addf %124, %150 : vector<8x9xf32>
    %152 = vector.extract_strided_slice %151 {offsets = [0, 0], sizes = [8, 8], strides = [1, 1]} : vector<8x9xf32> to vector<8x8xf32>
    %153 = vector.extract_strided_slice %151 {offsets = [0, 8], sizes = [8, 1], strides = [1, 1]} : vector<8x9xf32> to vector<8x1xf32>
    %154 = vector.extract_strided_slice %39 {offsets = [4, 0], sizes = [1, 8], strides = [1, 1]} : vector<5x36xf32> to vector<1x8xf32>
    %cst_62 = arith.constant dense<0.000000e+00> : vector<1x8xf32>
    %155 = tpu.matmul %154, %152, %cst_62 {dimension_numbers = #tpu.dot_dimension_numbers<[1], [1], [0], [0], [0, 0, 1, 0], [], []>} : vector<1x8xf32>, vector<8x8xf32>, vector<1x8xf32> -> vector<1x8xf32>
    %156 = vector.broadcast %153 : vector<8x1xf32> to vector<8x8xf32>
    %157 = vector.broadcast %155 : vector<1x8xf32> to vector<8x8xf32>
    %158 = arith.addf %156, %157 : vector<8x8xf32>
    %cst_63 = arith.constant 0.000000e+00 : f32
    %159 = vector.broadcast %cst_63 : f32 to vector<8x8xf32>
    %160 = arith.cmpf ogt, %158, %159 : vector<8x8xf32>
    %cst_64 = arith.constant 2.000000e-01 : f32
    %161 = vector.broadcast %cst_64 : f32 to vector<8x8xf32>
    %162 = arith.mulf %161, %158 : vector<8x8xf32>
    %163 = arith.select %160, %158, %162 : vector<8x8xi1>, vector<8x8xf32>
    %164 = arith.addf %163, %38 : vector<8x8xf32>
    %cst_65 = arith.constant dense<0xFF800000> : vector<8xf32>
    %165 = vector.multi_reduction <maximumf>, %164, %cst_65 [1] : vector<8x8xf32> to vector<8xf32>
    %166 = vector.shape_cast %165 : vector<8xf32> to vector<8x1xf32>
    %167 = vector.broadcast %166 : vector<8x1xf32> to vector<8x8xf32>
    %168 = arith.subf %164, %167 : vector<8x8xf32>
    %169 = math.exp %168 : vector<8x8xf32>
    %cst_66 = arith.constant dense<0.000000e+00> : vector<8xf32>
    %170 = vector.multi_reduction <add>, %169, %cst_66 [1] : vector<8x8xf32> to vector<8xf32>
    %171 = vector.shape_cast %170 : vector<8xf32> to vector<8x1xf32>
    %172 = vector.broadcast %171 : vector<8x1xf32> to vector<8x8xf32>
    %173 = arith.divf %169, %172 : vector<8x8xf32>
    %cst_67 = arith.constant dense<0.000000e+00> : vector<8x8xf32>
    %174 = tpu.matmul %173, %152, %cst_67 {dimension_numbers = #tpu.dot_dimension_numbers<[1], [0], [0], [1], [0, 0, 1, 1], [], []>} : vector<8x8xf32>, vector<8x8xf32>, vector<8x8xf32> -> vector<8x8xf32>
    %c0_68 = arith.constant 0 : index
    %c0_69 = arith.constant 0 : index
    %175 = vector.load %arg13[%c0_68, %c0_69] : memref<8x8xf32, #tpu.memory_space<vmem>>, vector<8x8xf32>
    tpu.vector_store %arg13[%c0_68, %c0_69], %174 {strides = array<i32>} : memref<8x8xf32, #tpu.memory_space<vmem>>, vector<8x8xf32>,
    return
  }
}

</mosaic_0001>

<llo_original>
// kernel: spatio_temporal_forward.1
$region0: #{spatio_temporal_forward.1}
  #allocation0 [shape = 'u32[]', space=smem, size = 0x4, offset = 0x4, fixed_abs, tag = 'smem constant byte address 0x4 - core index']
  #allocation1 [shape = 'u32[144,128]{1,0:T(1,128)}', space=vmem, size = 0x12000, scoped, tag = 'internal scratch']
  %s0 = inlined_call_operand.vmem [shape: f32[16,16], index: 0, kind: input, shape index: {}]
  %s1 = inlined_call_operand.vmem [shape: f32[16,80], index: 1, kind: input, shape index: {}]
  %s2 = inlined_call_operand.vmem [shape: f32[16,80], index: 2, kind: input, shape index: {}]
  %s3 = inlined_call_operand.vmem [shape: f32[32,16], index: 3, kind: input, shape index: {}]
  %s4 = inlined_call_operand.vmem [shape: f32[16,16], index: 4, kind: input, shape index: {}]
  %s5 = inlined_call_operand.vmem [shape: f32[16,80], index: 5, kind: input, shape index: {}]
  %s6 = inlined_call_operand.vmem [shape: f32[16,32], index: 6, kind: input, shape index: {}]
  %s7 = inlined_call_operand.hbm [shape: f32[8,16], index: 7, kind: input, shape index: {}]
  %s8 = inlined_call_operand.hbm [shape: f32[8,8], index: 8, kind: input, shape index: {}]
  %s9 = inlined_call_operand.hbm [shape: f32[16,36], index: 9, kind: input, shape index: {}]
  %s10 = inlined_call_operand.vmem [shape: f32[32,9], index: 10, kind: input, shape index: {}]
  %s11 = inlined_call_operand.hbm [shape: f32[5,36], index: 11, kind: input, shape index: {}]
  %s12 = inlined_call_operand.hbm [shape: f32[16,32], index: 12, kind: output, shape index: {0}]
  %s13 = inlined_call_operand.hbm [shape: f32[8,8], index: 13, kind: output, shape index: {1}]
  %14 = xla_tuple %s12, %s13
  %s15 = sld [smem:[#allocation0]]
  $region82: #{spatio_temporal_forward.1} parent=0
    _
  %s17 = ssub.s32 1, %s15
  %s18 = scalar_select 0, %s17, %s15
  $region1: #{spatio_temporal_forward.1} parent=0
    #allocation2 [shape = 'u8[4096]{0}', space=vmem, size = 0x1000, scoped, tag = 'input window, operand 7, single buffered']
    #allocation3 [shape = 's32[1]{0}', space=sflag, size = 0x4, scoped, tag = 'scoped memory for spatio_temporal_forward.1']
    #allocation4 [shape = 's32[1]{0}', space=sflag, size = 0x4, scoped, tag = 'scoped memory for spatio_temporal_forward.1']
    #allocation5 [shape = 'u8[4096]{0}', space=vmem, size = 0x1000, scoped, tag = 'input window, operand 8, single buffered']
    #allocation6 [shape = 's32[1]{0}', space=sflag, size = 0x4, scoped, tag = 'scoped memory for spatio_temporal_forward.1']
    #allocation7 [shape = 'u8[8192]{0}', space=vmem, size = 0x2000, scoped, tag = 'input window, operand 9, single buffered']
    #allocation8 [shape = 'u8[4096]{0}', space=vmem, size = 0x1000, scoped, tag = 'input window, operand 11, single buffered']
    #allocation9 [shape = 's32[1]{0}', space=sflag, size = 0x4, scoped, tag = 'scoped memory for spatio_temporal_forward.1']
    #allocation10 [shape = 'u8[8192]{0}', space=vmem, size = 0x2000, scoped, tag = 'output window, operand 0, single buffered']
    #allocation11 [shape = 'u8[4096]{0}', space=vmem, size = 0x1000, scoped, tag = 'output window, operand 1, single buffered']
    #allocation12 [shape = 's32[1]{0}', space=sflag, size = 0x4, scoped, tag = 'scoped memory for spatio_temporal_forward.1']
    %19 = vsyncpa [#allocation3], 0
    %20 = vsyncpa [#allocation6], 0
    %21 = vsyncpa [#allocation9], 0
    %22 = vsyncpa [#allocation4], 0
    %23 = vsyncpa [#allocation12], 0
    // Predicated region
    $region2: #{spatio_temporal_forward.1} parent=1 // pred_check
      _
    $region3: #{spatio_temporal_forward.1} parent=1 // pred_check_branch
      %25 = sbr.rel (0) target = $region5
    $region4: #{spatio_temporal_forward.1} parent=1 // pred_region
      _
    $region5: #{spatio_temporal_forward.1} parent=1 // pred_fallthru
      _
    // Predicated region
    $region6: #{spatio_temporal_forward.1} parent=1 // pred_check
      _
    $region7: #{spatio_temporal_forward.1} parent=1 // pred_check_branch
      %27 = sbr.rel (0) target = $region9
    $region8: #{spatio_temporal_forward.1} parent=1 // pred_region
      _
    $region9: #{spatio_temporal_forward.1} parent=1 // pred_fallthru
      _
    // Predicated region
    $region10: #{spatio_temporal_forward.1} parent=1 // pred_check
      _
    $region11: #{spatio_temporal_forward.1} parent=1 // pred_check_branch
      %29 = sbr.rel (0) target = $region13
    $region12: #{spatio_temporal_forward.1} parent=1 // pred_region
      _
    $region13: #{spatio_temporal_forward.1} parent=1 // pred_fallthru
      _
    // Predicated region
    $region14: #{spatio_temporal_forward.1} parent=1 // pred_check
      _
    $region15: #{spatio_temporal_forward.1} parent=1 // pred_check_branch
      %31 = sbr.rel (0) target = $region17
    $region16: #{spatio_temporal_forward.1} parent=1 // pred_region
      _
    $region17: #{spatio_temporal_forward.1} parent=1 // pred_fallthru
      _
    // Predicated region
    $region18: #{spatio_temporal_forward.1} parent=1 // pred_check
      _
    $region19: #{spatio_temporal_forward.1} parent=1 // pred_check_branch
      %33 = sbr.rel (0) target = $region21
    $region20: #{spatio_temporal_forward.1} parent=1 // pred_region
      _
    $region21: #{spatio_temporal_forward.1} parent=1 // pred_fallthru
      _
    // Predicated region
    $region22: #{spatio_temporal_forward.1} parent=1 // pred_check
      _
    $region23: #{spatio_temporal_forward.1} parent=1 // pred_check_branch
      %35 = sbr.rel (0) target = $region25
    $region24: #{spatio_temporal_forward.1} parent=1 // pred_region
      _
    $region25: #{spatio_temporal_forward.1} parent=1 // pred_fallthru
      _
    // Predicated region
    $region26: #{spatio_temporal_forward.1} parent=1 // pred_check
      _
    $region27: #{spatio_temporal_forward.1} parent=1 // pred_check_branch
      %37 = sbr.rel (0) target = $region29
    $region28: #{spatio_temporal_forward.1} parent=1 // pred_region
      _
    $region29: #{spatio_temporal_forward.1} parent=1 // pred_fallthru
      _
    // Predicated region
    $region30: #{spatio_temporal_forward.1} parent=1 // pred_check
      _
    $region31: #{spatio_temporal_forward.1} parent=1 // pred_check_branch
      %39 = sbr.rel (0) target = $region33
    $region32: #{spatio_temporal_forward.1} parent=1 // pred_region
      %s41 = ssub.s32 128, 128
      %42 = vsyncadd [#allocation3], %s41
      %s44 = sshll.u32 [#allocation2], 4
      %s45 = int_to_ptr.vmem [resolvable:$true] %s44
      %47 = dma.hbm_to_vmem [thread:$0]  %s7, 128, %s45, [#allocation3]
    $region33: #{spatio_temporal_forward.1} parent=1 // pred_fallthru
      _
    // Predicated region
    $region34: #{spatio_temporal_forward.1} parent=1 // pred_check
      _
    $region35: #{spatio_temporal_forward.1} parent=1 // pred_check_branch
      %49 = sbr.rel (0) target = $region37
    $region36: #{spatio_temporal_forward.1} parent=1 // pred_region
      %s51 = ssub.s32 128, 128
      %52 = vsyncadd [#allocation6], %s51
      %s54 = sshll.u32 [#allocation5], 4
      %s55 = int_to_ptr.vmem [resolvable:$true] %s54
      %57 = dma.hbm_to_vmem [thread:$0]  %s8, 128, %s55, [#allocation6]
    $region37: #{spatio_temporal_forward.1} parent=1 // pred_fallthru
      _
    // Predicated region
    $region38: #{spatio_temporal_forward.1} parent=1 // pred_check
      _
    $region39: #{spatio_temporal_forward.1} parent=1 // pred_check_branch
      %59 = sbr.rel (0) target = $region41
    $region40: #{spatio_temporal_forward.1} parent=1 // pred_region
      %s61 = ssub.s32 256, 256
      %62 = vsyncadd [#allocation6], %s61
      %s63 = sshll.u32 [#allocation7], 4
      %s64 = int_to_ptr.vmem [resolvable:$true] %s63
      %69 = dma.hbm_to_vmem [thread:$0]  %s9, 256, %s64, [#allocation6], 128, 128, 8
    $region41: #{spatio_temporal_forward.1} parent=1 // pred_fallthru
      _
    // Predicated region
    $region42: #{spatio_temporal_forward.1} parent=1 // pred_check
      _
    $region43: #{spatio_temporal_forward.1} parent=1 // pred_check_branch
      %71 = sbr.rel (0) target = $region45
    $region44: #{spatio_temporal_forward.1} parent=1 // pred_region
      _
    $region45: #{spatio_temporal_forward.1} parent=1 // pred_fallthru
      _
    // Predicated region
    $region46: #{spatio_temporal_forward.1} parent=1 // pred_check
      _
    $region47: #{spatio_temporal_forward.1} parent=1 // pred_check_branch
      %73 = sbr.rel (0) target = $region49
    $region48: #{spatio_temporal_forward.1} parent=1 // pred_region
      %s75 = ssub.s32 128, 128
      %76 = vsyncadd [#allocation9], %s75
      %s78 = sshll.u32 [#allocation8], 4
      %s79 = int_to_ptr.vmem [resolvable:$true] %s78
      %81 = dma.hbm_to_vmem [thread:$0]  %s11, 128, %s79, [#allocation9]
    $region49: #{spatio_temporal_forward.1} parent=1 // pred_fallthru
      _
    // Predicated region
    $region50: #{spatio_temporal_forward.1} parent=1 // pred_check
      _
    $region51: #{spatio_temporal_forward.1} parent=1 // pred_check_branch
      %83 = sbr.rel (0) target = $region53
    $region52: #{spatio_temporal_forward.1} parent=1 // pred_region
      %84 = dma.done [#allocation3], 128
    $region53: #{spatio_temporal_forward.1} parent=1 // pred_fallthru
      _
    // Predicated region
    $region54: #{spatio_temporal_forward.1} parent=1 // pred_check
      _
    $region55: #{spatio_temporal_forward.1} parent=1 // pred_check_branch
      %86 = sbr.rel (0) target = $region57
    $region56: #{spatio_temporal_forward.1} parent=1 // pred_region
      %87 = dma.done [#allocation6], 128
    $region57: #{spatio_temporal_forward.1} parent=1 // pred_fallthru
      _
    // Predicated region
    $region58: #{spatio_temporal_forward.1} parent=1 // pred_check
      _
    $region59: #{spatio_temporal_forward.1} parent=1 // pred_check_branch
      %89 = sbr.rel (0) target = $region61
    $region60: #{spatio_temporal_forward.1} parent=1 // pred_region
      %90 = dma.done [#allocation6], 256
    $region61: #{spatio_temporal_forward.1} parent=1 // pred_fallthru
      _
    // Predicated region
    $region62: #{spatio_temporal_forward.1} parent=1 // pred_check
      _
    $region63: #{spatio_temporal_forward.1} parent=1 // pred_check_branch
      %92 = sbr.rel (0) target = $region65
    $region64: #{spatio_temporal_forward.1} parent=1 // pred_region
      %93 = dma.done [#allocation9], 128
    $region65: #{spatio_temporal_forward.1} parent=1 // pred_fallthru
      _
    %v94 = vld [vmem:[%s0] sm:$0xff]
    %v95 = vld [vmem:[%s0 + $0x8] sm:$0xff]
    %v96 = vld [vmem:[%s2] sm:$0xff]
    %v97 = vld [vmem:[%s2 + $0x8] sm:$0xff]
    %v98 = vld [vmem:[%s1] sm:$0xff]
    %v99 = vld [vmem:[%s1 + $0x8] sm:$0xff]
    %vm100 = vcmask 130048
    %v102 = vsel %vm100, %v94, 0
    %v105 = vsel %vm100, %v95, 0
    %107 = vmatprep.subr.mxu0 0.0
    %108 = vmatpush1.msra.mxu0 0.0
    %109 = vmatprep.subr.mxu0 0.0
    %110 = vmatpush1.msra.mxu0 0.0
    %111 = vmatprep.subr.mxu0 0.0
    %112 = vmatpush1.msra.mxu0 0.0
    %113 = vmatprep.subr.mxu0 0.0
    %114 = vmatpush1.msra.mxu0 0.0
    %115 = vmatprep.subr.mxu0 0.0
    %116 = vmatpush1.msra.mxu0 0.0
    %117 = vmatprep.subr.mxu0 0.0
    %118 = vmatpush1.msra.mxu0 0.0
    %119 = vmatprep.subr.mxu0 0.0
    %120 = vmatpush1.msra.mxu0 0.0
    %121 = vmatprep.subr.mxu0 0.0
    %122 = vmatpush1.msra.mxu0 0.0
    %123 = vmatprep.subr.mxu0 0.0
    %124 = vmatpush1.msra.mxu0 0.0
    %125 = vmatprep.subr.mxu0 0.0
    %126 = vmatpush1.msra.mxu0 0.0
    %127 = vmatprep.subr.mxu0 0.0
    %128 = vmatpush1.msra.mxu0 0.0
    %129 = vmatprep.subr.mxu0 0.0
    %130 = vmatpush1.msra.mxu0 0.0
    %131 = vmatprep.subr.mxu0 0.0
    %132 = vmatpush1.msra.mxu0 0.0
    %133 = vmatprep.subr.mxu0 0.0
    %134 = vmatpush1.msra.mxu0 0.0
    %135 = vmatprep.subr.mxu0 0.0
    %136 = vmatpush1.msra.mxu0 %v97
    %137 = vmatprep.subr.mxu0 0.0
    %138 = vmatpush1.msra.mxu0 %v96
    %139 = vmatprep.subr.mxu0 0.0
    %140 = vmatpush2.msra.mxu0 0.0
    %141 = vmatprep.subr.mxu0 0.0
    %142 = vmatpush2.msra.mxu0 0.0
    %143 = vmatprep.subr.mxu0 0.0
    %144 = vmatpush2.msra.mxu0 0.0
    %145 = vmatprep.subr.mxu0 0.0
    %146 = vmatpush2.msra.mxu0 0.0
    %147 = vmatprep.subr.mxu0 0.0
    %148 = vmatpush2.msra.mxu0 0.0
    %149 = vmatprep.subr.mxu0 0.0
    %150 = vmatpush2.msra.mxu0 0.0
    %151 = vmatprep.subr.mxu0 0.0
    %152 = vmatpush2.msra.mxu0 0.0
    %153 = vmatprep.subr.mxu0 0.0
    %154 = vmatpush2.msra.mxu0 0.0
    %155 = vmatprep.subr.mxu0 0.0
    %156 = vmatpush2.msra.mxu0 0.0
    %157 = vmatprep.subr.mxu0 0.0
    %158 = vmatpush2.msra.mxu0 0.0
    %159 = vmatprep.subr.mxu0 0.0
    %160 = vmatpush2.msra.mxu0 0.0
    %161 = vmatprep.subr.mxu0 0.0
    %162 = vmatpush2.msra.mxu0 0.0
    %163 = vmatprep.subr.mxu0 0.0
    %164 = vmatpush2.msra.mxu0 0.0
    %165 = vmatprep.subr.mxu0 0.0
    %166 = vmatpush2.msra.mxu0 0.0
    %167 = vmatprep.subr.mxu0 0.0
    %168 = vmatpush2.msra.mxu0 0.0
    %169 = vmatprep.subr.mxu0 0.0
    %170 = vmatpush2.msra.mxu0 0.0
    %171 = vmatprep.mubr.f32.mxu0 0.0
    %172 = vmatmul.mubr.f32.gmra.mxu0 %v102
    %v173 = vpop.f32.mrf.mxu0
    %v174 = vadd.f32 %v98, %v173
    %v175 = vpop.f32.mrf.mxu0
    %176 = vmatprep.mubr.f32.mxu0 0.0
    %177 = vmatmul.mubr.f32.gmra.mxu0 %v105
    %v178 = vpop.f32.mrf.mxu0
    %v179 = vadd.f32 %v99, %v178
    %v180 = vpop.f32.mrf.mxu0
    %181 = vdwg.mxu0
    %v182 = vxor.u32 %v174, 2147483648
    %v183 = vxor.u32 %v179, 2147483648
    %v184 = vmul.f32 %v182, 1.442695
    %v185 = vpow.pop %v184
    %v186 = vmul.f32 %v183, 1.442695
    %v187 = vpow.pop %v186
    %v188 = vadd.f32 %v185, 1.0
    %v189 = vadd.f32 %v187, 1.0
    %v190 = vrcp.pop %v188
    %v191 = vmul.f32 1.0, %v190
    %v192 = vrcp.pop %v189
    %v193 = vmul.f32 1.0, %v192
    %196 = vrot.lane.b32.xlu0 %v191, 96
    %v197 = vpop.permute.xlu0 %196
    %198 = vrot.lane.b32.xlu0 %v193, 96
    %v199 = vpop.permute.xlu0 %198
    %v202 = vmul.f32 %v174, %v197
    %v203 = vmul.f32 %v179, %v199
    %v204 = vld [vmem:[%s3] sm:$0xff]
    %v205 = vld [vmem:[%s3 + $0x8] sm:$0xff]
    %v206 = vld [vmem:[%s3 + $0x10] sm:$0xff]
    %v207 = vld [vmem:[%s3 + $0x18] sm:$0xff]
    %vm208 = vcmask 261120
    %v210 = vsel %vm208, %v202, 0
    %v213 = vsel %vm208, %v203, 0
    %215 = vmatprep.subr.mxu0 0.0
    %216 = vmatpush1.msra.mxu0 0.0
    %217 = vmatprep.subr.mxu0 0.0
    %218 = vmatpush1.msra.mxu0 0.0
    %219 = vmatprep.subr.mxu0 0.0
    %220 = vmatpush1.msra.mxu0 0.0
    %221 = vmatprep.subr.mxu0 0.0
    %222 = vmatpush1.msra.mxu0 0.0
    %223 = vmatprep.subr.mxu0 0.0
    %224 = vmatpush1.msra.mxu0 0.0
    %225 = vmatprep.subr.mxu0 0.0
    %226 = vmatpush1.msra.mxu0 0.0
    %227 = vmatprep.subr.mxu0 0.0
    %228 = vmatpush1.msra.mxu0 0.0
    %229 = vmatprep.subr.mxu0 0.0
    %230 = vmatpush1.msra.mxu0 0.0
    %231 = vmatprep.subr.mxu0 0.0
    %232 = vmatpush1.msra.mxu0 0.0
    %233 = vmatprep.subr.mxu0 0.0
    %234 = vmatpush1.msra.mxu0 0.0
    %235 = vmatprep.subr.mxu0 0.0
    %236 = vmatpush1.msra.mxu0 0.0
    %237 = vmatprep.subr.mxu0 0.0
    %238 = vmatpush1.msra.mxu0 0.0
    %239 = vmatprep.subr.mxu0 0.0
    %240 = vmatpush1.msra.mxu0 %v207
    %241 = vmatprep.subr.mxu0 0.0
    %242 = vmatpush1.msra.mxu0 %v206
    %243 = vmatprep.subr.mxu0 0.0
    %244 = vmatpush1.msra.mxu0 %v205
    %245 = vmatprep.subr.mxu0 0.0
    %246 = vmatpush1.msra.mxu0 %v204
    %247 = vmatprep.subr.mxu0 0.0
    %248 = vmatpush2.msra.mxu0 0.0
    %249 = vmatprep.subr.mxu0 0.0
    %250 = vmatpush2.msra.mxu0 0.0
    %251 = vmatprep.subr.mxu0 0.0
    %252 = vmatpush2.msra.mxu0 0.0
    %253 = vmatprep.subr.mxu0 0.0
    %254 = vmatpush2.msra.mxu0 0.0
    %255 = vmatprep.subr.mxu0 0.0
    %256 = vmatpush2.msra.mxu0 0.0
    %257 = vmatprep.subr.mxu0 0.0
    %258 = vmatpush2.msra.mxu0 0.0
    %259 = vmatprep.subr.mxu0 0.0
    %260 = vmatpush2.msra.mxu0 0.0
    %261 = vmatprep.subr.mxu0 0.0
    %262 = vmatpush2.msra.mxu0 0.0
    %263 = vmatprep.subr.mxu0 0.0
    %264 = vmatpush2.msra.mxu0 0.0
    %265 = vmatprep.subr.mxu0 0.0
    %266 = vmatpush2.msra.mxu0 0.0
    %267 = vmatprep.subr.mxu0 0.0
    %268 = vmatpush2.msra.mxu0 0.0
    %269 = vmatprep.subr.mxu0 0.0
    %270 = vmatpush2.msra.mxu0 0.0
    %271 = vmatprep.subr.mxu0 0.0
    %272 = vmatpush2.msra.mxu0 0.0
    %273 = vmatprep.subr.mxu0 0.0
    %274 = vmatpush2.msra.mxu0 0.0
    %275 = vmatprep.subr.mxu0 0.0
    %276 = vmatpush2.msra.mxu0 0.0
    %277 = vmatprep.subr.mxu0 0.0
    %278 = vmatpush2.msra.mxu0 0.0
    %279 = vmatprep.mubr.f32.mxu0 0.0
    %280 = vmatmul.mubr.f32.gmra.mxu0 %v210
    %v281 = vpop.f32.mrf.mxu0
    %v282 = vadd.f32 0.0, %v281
    %v283 = vpop.f32.mrf.mxu0
    %284 = vmatprep.mubr.f32.mxu0 0.0
    %285 = vmatmul.mubr.f32.gmra.mxu0 %v213
    %v286 = vpop.f32.mrf.mxu0
    %v287 = vadd.f32 0.0, %v286
    %v288 = vpop.f32.mrf.mxu0
    %289 = vdwg.mxu0
    %v290 = vld [vmem:[%s5] sm:$0xff]
    %v291 = vld [vmem:[%s5 + $0x8] sm:$0xff]
    %294 = vrot.lane.b32.xlu0 %v290, 112
    %v295 = vpop.permute.xlu0 %294
    %296 = vrot.lane.b32.xlu0 %v291, 112
    %v297 = vpop.permute.xlu0 %296
    %v300 = vmul.f32 %v282, %v295
    %v301 = vmul.f32 %v287, %v297
    %302 = vrot.lane.b32.xlu0 %v290, 96
    %v303 = vpop.permute.xlu0 %302
    %304 = vrot.lane.b32.xlu0 %v291, 96
    %v305 = vpop.permute.xlu0 %304
    %v308 = vadd.f32 %v300, %v303
    %v309 = vadd.f32 %v301, %v305
    %v310 = vld [vmem:[%s4] sm:$0xff]
    %v311 = vld [vmem:[%s4 + $0x8] sm:$0xff]
    %v313 = vsel %vm100, %v310, 0
    %v316 = vsel %vm100, %v311, 0
    %318 = vmatprep.subr.mxu0 0.0
    %319 = vmatpush1.msra.mxu0 0.0
    %320 = vmatprep.subr.mxu0 0.0
    %321 = vmatpush1.msra.mxu0 0.0
    %322 = vmatprep.subr.mxu0 0.0
    %323 = vmatpush1.msra.mxu0 0.0
    %324 = vmatprep.subr.mxu0 0.0
    %325 = vmatpush1.msra.mxu0 0.0
    %326 = vmatprep.subr.mxu0 0.0
    %327 = vmatpush1.msra.mxu0 0.0
    %328 = vmatprep.subr.mxu0 0.0
    %329 = vmatpush1.msra.mxu0 0.0
    %330 = vmatprep.subr.mxu0 0.0
    %331 = vmatpush1.msra.mxu0 0.0
    %332 = vmatprep.subr.mxu0 0.0
    %333 = vmatpush1.msra.mxu0 0.0
    %334 = vmatprep.subr.mxu0 0.0
    %335 = vmatpush1.msra.mxu0 0.0
    %336 = vmatprep.subr.mxu0 0.0
    %337 = vmatpush1.msra.mxu0 0.0
    %338 = vmatprep.subr.mxu0 0.0
    %339 = vmatpush1.msra.mxu0 0.0
    %340 = vmatprep.subr.mxu0 0.0
    %341 = vmatpush1.msra.mxu0 0.0
    %342 = vmatprep.subr.mxu0 0.0
    %343 = vmatpush1.msra.mxu0 0.0
    %344 = vmatprep.subr.mxu0 0.0
    %345 = vmatpush1.msra.mxu0 0.0
    %346 = vmatprep.subr.mxu0 0.0
    %347 = vmatpush1.msra.mxu0 %v309
    %348 = vmatprep.subr.mxu0 0.0
    %349 = vmatpush1.msra.mxu0 %v308
    %350 = vmatprep.subr.mxu0 0.0
    %351 = vmatpush2.msra.mxu0 0.0
    %352 = vmatprep.subr.mxu0 0.0
    %353 = vmatpush2.msra.mxu0 0.0
    %354 = vmatprep.subr.mxu0 0.0
    %355 = vmatpush2.msra.mxu0 0.0
    %356 = vmatprep.subr.mxu0 0.0
    %357 = vmatpush2.msra.mxu0 0.0
    %358 = vmatprep.subr.mxu0 0.0
    %359 = vmatpush2.msra.mxu0 0.0
    %360 = vmatprep.subr.mxu0 0.0
    %361 = vmatpush2.msra.mxu0 0.0
    %362 = vmatprep.subr.mxu0 0.0
    %363 = vmatpush2.msra.mxu0 0.0
    %364 = vmatprep.subr.mxu0 0.0
    %365 = vmatpush2.msra.mxu0 0.0
    %366 = vmatprep.subr.mxu0 0.0
    %367 = vmatpush2.msra.mxu0 0.0
    %368 = vmatprep.subr.mxu0 0.0
    %369 = vmatpush2.msra.mxu0 0.0
    %370 = vmatprep.subr.mxu0 0.0
    %371 = vmatpush2.msra.mxu0 0.0
    %372 = vmatprep.subr.mxu0 0.0
    %373 = vmatpush2.msra.mxu0 0.0
    %374 = vmatprep.subr.mxu0 0.0
    %375 = vmatpush2.msra.mxu0 0.0
    %376 = vmatprep.subr.mxu0 0.0
    %377 = vmatpush2.msra.mxu0 0.0
    %378 = vmatprep.subr.mxu0 0.0
    %379 = vmatpush2.msra.mxu0 0.0
    %380 = vmatprep.subr.mxu0 0.0
    %381 = vmatpush2.msra.mxu0 0.0
    %382 = vmatprep.mubr.f32.mxu0 0.0
    %383 = vmatmul.mubr.f32.gmra.mxu0 %v313
    %v384 = vpop.f32.mrf.mxu0
    %v385 = vadd.f32 0.0, %v384
    %v386 = vpop.f32.mrf.mxu0
    %387 = vmatprep.mubr.f32.mxu0 0.0
    %388 = vmatmul.mubr.f32.gmra.mxu0 %v316
    %v389 = vpop.f32.mrf.mxu0
    %v390 = vadd.f32 0.0, %v389
    %v391 = vpop.f32.mrf.mxu0
    %392 = vdwg.mxu0
    %v393 = vmul.f32 %v290, %v385
    %v394 = vmul.f32 %v291, %v390
    %397 = vrot.lane.b32.xlu0 %v174, 64
    %v398 = vpop.permute.xlu0 %397
    %399 = vrot.lane.b32.xlu0 %v179, 64
    %v400 = vpop.permute.xlu0 %399
    %v403 = vmul.f32 %v393, %v398
    %v404 = vmul.f32 %v394, %v400
    %v405 = vld [vmem:[%s6] sm:$0xff]
    %v406 = vld [vmem:[%s6 + $0x8] sm:$0xff]
    %v407 = vlaneseq
    %v408 = vshrl.u32 %v407, 7
    %v409 = vsub.s32 0, %v408
    %v410 = vrot.slane %v290, %v409
    %412 = vrot.lane.b32.xlu0 %v410, 80
    %v413 = vpop.permute.xlu0 %412
    %v416 = vsel %vm100, %v403, 0
    %v419 = vsel %vm100, %v404, 0
    %421 = vmatprep.subr.mxu0 0.0
    %422 = vmatpush1.msra.mxu0 0.0
    %423 = vmatprep.subr.mxu0 0.0
    %424 = vmatpush1.msra.mxu0 0.0
    %425 = vmatprep.subr.mxu0 0.0
    %426 = vmatpush1.msra.mxu0 0.0
    %427 = vmatprep.subr.mxu0 0.0
    %428 = vmatpush1.msra.mxu0 0.0
    %429 = vmatprep.subr.mxu0 0.0
    %430 = vmatpush1.msra.mxu0 0.0
    %431 = vmatprep.subr.mxu0 0.0
    %432 = vmatpush1.msra.mxu0 0.0
    %433 = vmatprep.subr.mxu0 0.0
    %434 = vmatpush1.msra.mxu0 0.0
    %435 = vmatprep.subr.mxu0 0.0
    %436 = vmatpush1.msra.mxu0 0.0
    %437 = vmatprep.subr.mxu0 0.0
    %438 = vmatpush1.msra.mxu0 0.0
    %439 = vmatprep.subr.mxu0 0.0
    %440 = vmatpush1.msra.mxu0 0.0
    %441 = vmatprep.subr.mxu0 0.0
    %442 = vmatpush1.msra.mxu0 0.0
    %443 = vmatprep.subr.mxu0 0.0
    %444 = vmatpush1.msra.mxu0 0.0
    %445 = vmatprep.subr.mxu0 0.0
    %446 = vmatpush1.msra.mxu0 0.0
    %447 = vmatprep.subr.mxu0 0.0
    %448 = vmatpush1.msra.mxu0 0.0
    %449 = vmatprep.subr.mxu0 0.0
    %450 = vmatpush1.msra.mxu0 %v406
    %451 = vmatprep.subr.mxu0 0.0
    %452 = vmatpush1.msra.mxu0 %v405
    %453 = vmatprep.subr.mxu0 0.0
    %454 = vmatpush2.msra.mxu0 0.0
    %455 = vmatprep.subr.mxu0 0.0
    %456 = vmatpush2.msra.mxu0 0.0
    %457 = vmatprep.subr.mxu0 0.0
    %458 = vmatpush2.msra.mxu0 0.0
    %459 = vmatprep.subr.mxu0 0.0
    %460 = vmatpush2.msra.mxu0 0.0
    %461 = vmatprep.subr.mxu0 0.0
    %462 = vmatpush2.msra.mxu0 0.0
    %463 = vmatprep.subr.mxu0 0.0
    %464 = vmatpush2.msra.mxu0 0.0
    %465 = vmatprep.subr.mxu0 0.0
    %466 = vmatpush2.msra.mxu0 0.0
    %467 = vmatprep.subr.mxu0 0.0
    %468 = vmatpush2.msra.mxu0 0.0
    %469 = vmatprep.subr.mxu0 0.0
    %470 = vmatpush2.msra.mxu0 0.0
    %471 = vmatprep.subr.mxu0 0.0
    %472 = vmatpush2.msra.mxu0 0.0
    %473 = vmatprep.subr.mxu0 0.0
    %474 = vmatpush2.msra.mxu0 0.0
    %475 = vmatprep.subr.mxu0 0.0
    %476 = vmatpush2.msra.mxu0 0.0
    %477 = vmatprep.subr.mxu0 0.0
    %478 = vmatpush2.msra.mxu0 0.0
    %479 = vmatprep.subr.mxu0 0.0
    %480 = vmatpush2.msra.mxu0 0.0
    %481 = vmatprep.subr.mxu0 0.0
    %482 = vmatpush2.msra.mxu0 0.0
    %483 = vmatprep.subr.mxu0 0.0
    %484 = vmatpush2.msra.mxu0 0.0
    %485 = vmatprep.mubr.f32.mxu0 0.0
    %486 = vmatmul.mubr.f32.gmra.mxu0 %v416
    %v487 = vpop.f32.mrf.mxu0
    %v488 = vadd.f32 %v413, %v487
    %v489 = vpop.f32.mrf.mxu0
    %490 = vmatprep.mubr.f32.mxu0 0.0
    %491 = vmatmul.mubr.f32.gmra.mxu0 %v419
    %v492 = vpop.f32.mrf.mxu0
    %v493 = vadd.f32 %v413, %v492
    %v494 = vpop.f32.mrf.mxu0
    %495 = vdwg.mxu0
    %496 = vst.msk [vmem:[#allocation10] sm:$0xff] %vm208, %v488
    %497 = vst.msk [vmem:[#allocation10 + $0x8] sm:$0xff] %vm208, %v493
    %v498 = vld [vmem:[#allocation2] sm:$0xff]
    %v499 = vld [vmem:[#allocation5] sm:$0xff]
    %vm500 = vcmp.gt.f32.partialorder %v499, 0.0
    %v501 = vsel %vm500, 0.0, -1e+30
    %v502 = vld [vmem:[#allocation8] sm:$0x1f]
    %v503 = vld [vmem:[%s10] sm:$0xff]
    %v504 = vld [vmem:[%s10 + $0x8] sm:$0xff]
    %v505 = vld [vmem:[%s10 + $0x10] sm:$0xff]
    %v506 = vld [vmem:[%s10 + $0x18] sm:$0xff]
    %v507 = vld [vmem:[#allocation7] sm:$0xff]
    %v508 = vld [vmem:[#allocation7 + $0x8] sm:$0xff]
    %v510 = vsel %vm100, %v498, 0
    %512 = vmatprep.subr.mxu0 0.0
    %513 = vmatpush1.msra.mxu0 0.0
    %514 = vmatprep.subr.mxu0 0.0
    %515 = vmatpush1.msra.mxu0 0.0
    %516 = vmatprep.subr.mxu0 0.0
    %517 = vmatpush1.msra.mxu0 0.0
    %518 = vmatprep.subr.mxu0 0.0
    %519 = vmatpush1.msra.mxu0 0.0
    %520 = vmatprep.subr.mxu0 0.0
    %521 = vmatpush1.msra.mxu0 0.0
    %522 = vmatprep.subr.mxu0 0.0
    %523 = vmatpush1.msra.mxu0 0.0
    %524 = vmatprep.subr.mxu0 0.0
    %525 = vmatpush1.msra.mxu0 0.0
    %526 = vmatprep.subr.mxu0 0.0
    %527 = vmatpush1.msra.mxu0 0.0
    %528 = vmatprep.subr.mxu0 0.0
    %529 = vmatpush1.msra.mxu0 0.0
    %530 = vmatprep.subr.mxu0 0.0
    %531 = vmatpush1.msra.mxu0 0.0
    %532 = vmatprep.subr.mxu0 0.0
    %533 = vmatpush1.msra.mxu0 0.0
    %534 = vmatprep.subr.mxu0 0.0
    %535 = vmatpush1.msra.mxu0 0.0
    %536 = vmatprep.subr.mxu0 0.0
    %537 = vmatpush1.msra.mxu0 0.0
    %538 = vmatprep.subr.mxu0 0.0
    %539 = vmatpush1.msra.mxu0 0.0
    %540 = vmatprep.subr.mxu0 0.0
    %541 = vmatpush1.msra.mxu0 %v508
    %542 = vmatprep.subr.mxu0 0.0
    %543 = vmatpush1.msra.mxu0 %v507
    %544 = vmatprep.subr.mxu0 0.0
    %545 = vmatpush2.msra.mxu0 0.0
    %546 = vmatprep.subr.mxu0 0.0
    %547 = vmatpush2.msra.mxu0 0.0
    %548 = vmatprep.subr.mxu0 0.0
    %549 = vmatpush2.msra.mxu0 0.0
    %550 = vmatprep.subr.mxu0 0.0
    %551 = vmatpush2.msra.mxu0 0.0
    %552 = vmatprep.subr.mxu0 0.0
    %553 = vmatpush2.msra.mxu0 0.0
    %554 = vmatprep.subr.mxu0 0.0
    %555 = vmatpush2.msra.mxu0 0.0
    %556 = vmatprep.subr.mxu0 0.0
    %557 = vmatpush2.msra.mxu0 0.0
    %558 = vmatprep.subr.mxu0 0.0
    %559 = vmatpush2.msra.mxu0 0.0
    %560 = vmatprep.subr.mxu0 0.0
    %561 = vmatpush2.msra.mxu0 0.0
    %562 = vmatprep.subr.mxu0 0.0
    %563 = vmatpush2.msra.mxu0 0.0
    %564 = vmatprep.subr.mxu0 0.0
    %565 = vmatpush2.msra.mxu0 0.0
    %566 = vmatprep.subr.mxu0 0.0
    %567 = vmatpush2.msra.mxu0 0.0
    %568 = vmatprep.subr.mxu0 0.0
    %569 = vmatpush2.msra.mxu0 0.0
    %570 = vmatprep.subr.mxu0 0.0
    %571 = vmatpush2.msra.mxu0 0.0
    %572 = vmatprep.subr.mxu0 0.0
    %573 = vmatpush2.msra.mxu0 0.0
    %574 = vmatprep.subr.mxu0 0.0
    %575 = vmatpush2.msra.mxu0 0.0
    %576 = vmatprep.mubr.f32.mxu0 0.0
    %577 = vmatmul.mubr.f32.gmra.mxu0 %v510
    %v578 = vpop.f32.mrf.mxu0
    %v579 = vadd.f32 0.0, %v578
    %v580 = vpop.f32.mrf.mxu0
    %581 = vdwg.mxu0
    %vm582 = vcmask 293888
    %v584 = vsel %vm582, %v502, 0
    %v587 = vsel %vm582, %v579, 0
    %589 = vmatprep.subr.mxu0 0.0
    %590 = vmatpush1.xpose.msra.mxu0 0.0
    %591 = vmatprep.subr.mxu0 0.0
    %592 = vmatpush1.xpose.msra.mxu0 0.0
    %593 = vmatprep.subr.mxu0 0.0
    %594 = vmatpush1.xpose.msra.mxu0 0.0
    %595 = vmatprep.subr.mxu0 0.0
    %596 = vmatpush1.xpose.msra.mxu0 0.0
    %597 = vmatprep.subr.mxu0 0.0
    %598 = vmatpush1.xpose.msra.mxu0 0.0
    %599 = vmatprep.subr.mxu0 0.0
    %600 = vmatpush1.xpose.msra.mxu0 0.0
    %601 = vmatprep.subr.mxu0 0.0
    %602 = vmatpush1.xpose.msra.mxu0 0.0
    %603 = vmatprep.subr.mxu0 0.0
    %604 = vmatpush1.xpose.msra.mxu0 0.0
    %605 = vmatprep.subr.mxu0 0.0
    %606 = vmatpush1.xpose.msra.mxu0 0.0
    %607 = vmatprep.subr.mxu0 0.0
    %608 = vmatpush1.xpose.msra.mxu0 0.0
    %609 = vmatprep.subr.mxu0 0.0
    %610 = vmatpush1.xpose.msra.mxu0 0.0
    %611 = vmatprep.subr.mxu0 0.0
    %612 = vmatpush1.xpose.msra.mxu0 0.0
    %613 = vmatprep.subr.mxu0 0.0
    %614 = vmatpush1.xpose.msra.mxu0 0.0
    %615 = vmatprep.subr.mxu0 0.0
    %616 = vmatpush1.xpose.msra.mxu0 0.0
    %617 = vmatprep.subr.mxu0 0.0
    %618 = vmatpush1.xpose.msra.mxu0 0.0
    %619 = vmatprep.subr.mxu0 0.0
    %620 = vmatpush1.xpose.msra.mxu0 %v587
    %621 = vmatprep.subr.mxu0 0.0
    %622 = vmatpush2.xpose.msra.mxu0 0.0
    %623 = vmatprep.subr.mxu0 0.0
    %624 = vmatpush2.xpose.msra.mxu0 0.0
    %625 = vmatprep.subr.mxu0 0.0
    %626 = vmatpush2.xpose.msra.mxu0 0.0
    %627 = vmatprep.subr.mxu0 0.0
    %628 = vmatpush2.xpose.msra.mxu0 0.0
    %629 = vmatprep.subr.mxu0 0.0
    %630 = vmatpush2.xpose.msra.mxu0 0.0
    %631 = vmatprep.subr.mxu0 0.0
    %632 = vmatpush2.xpose.msra.mxu0 0.0
    %633 = vmatprep.subr.mxu0 0.0
    %634 = vmatpush2.xpose.msra.mxu0 0.0
    %635 = vmatprep.subr.mxu0 0.0
    %636 = vmatpush2.xpose.msra.mxu0 0.0
    %637 = vmatprep.subr.mxu0 0.0
    %638 = vmatpush2.xpose.msra.mxu0 0.0
    %639 = vmatprep.subr.mxu0 0.0
    %640 = vmatpush2.xpose.msra.mxu0 0.0
    %641 = vmatprep.subr.mxu0 0.0
    %642 = vmatpush2.xpose.msra.mxu0 0.0
    %643 = vmatprep.subr.mxu0 0.0
    %644 = vmatpush2.xpose.msra.mxu0 0.0
    %645 = vmatprep.subr.mxu0 0.0
    %646 = vmatpush2.xpose.msra.mxu0 0.0
    %647 = vmatprep.subr.mxu0 0.0
    %648 = vmatpush2.xpose.msra.mxu0 0.0
    %649 = vmatprep.subr.mxu0 0.0
    %650 = vmatpush2.xpose.msra.mxu0 0.0
    %651 = vmatprep.subr.mxu0 0.0
    %652 = vmatpush2.xpose.msra.mxu0 0.0
    %653 = vmatprep.mubr.f32.mxu0 0.0
    %654 = vmatmul.mubr.f32.gmra.mxu0 %v584
    %v655 = vpop.f32.mrf.mxu0
    %v656 = vadd.f32 0.0, %v655
    %v657 = vpop.f32.mrf.mxu0
    %658 = vdwg.mxu0
    %659 = vset.pattern.permute.xlu0 32
    %660 = vperm.xlu0 %659, %v579
    %v661 = vpop.permute.xlu0 %660
    %v663 = vlaneseq
    %v664 = vshrl.u32 %v663, 7
    %v665 = vsub.s32 0, %v664
    %v666 = vrot.slane %v656, %v665
    %v667 = vadd.f32 %v661, %v666
    %vm668 = vcmp.gt.f32.partialorder %v667, 0.0
    %v669 = vmul.f32 %v667, 0.2
    %v670 = vsel %vm668, %v667, %v669
    %v671 = vadd.f32 %v670, %v501
    %vm672 = vcmask 64512
    %v673 = vsel %vm672, %v671, -inf
    %674 = vmax.xlane.f32.xlu0 %v673
    %v675 = vpop.xlane.xlu0 %674
    %v676 = vsub.f32 %v671, %v675
    %v677 = vmul.f32 %v676, 1.442695
    %v678 = vpow.pop %v677
    %v679 = vsel %vm672, %v678, 0.0
    %680 = vadd.xlane.f32.xlu0 %v679
    %v681 = vpop.xlane.xlu0 %680
    %v682 = vrcp.pop %v681
    %v683 = vmul.f32 %v678, %v682
    %v685 = vsel %vm672, %v683, 0
    %687 = vmatprep.subr.mxu0 0.0
    %688 = vmatpush1.msra.mxu0 0.0
    %689 = vmatprep.subr.mxu0 0.0
    %690 = vmatpush1.msra.mxu0 0.0
    %691 = vmatprep.subr.mxu0 0.0
    %692 = vmatpush1.msra.mxu0 0.0
    %693 = vmatprep.subr.mxu0 0.0
    %694 = vmatpush1.msra.mxu0 0.0
    %695 = vmatprep.subr.mxu0 0.0
    %696 = vmatpush1.msra.mxu0 0.0
    %697 = vmatprep.subr.mxu0 0.0
    %698 = vmatpush1.msra.mxu0 0.0
    %699 = vmatprep.subr.mxu0 0.0
    %700 = vmatpush1.msra.mxu0 0.0
    %701 = vmatprep.subr.mxu0 0.0
    %702 = vmatpush1.msra.mxu0 0.0
    %703 = vmatprep.subr.mxu0 0.0
    %704 = vmatpush1.msra.mxu0 0.0
    %705 = vmatprep.subr.mxu0 0.0
    %706 = vmatpush1.msra.mxu0 0.0
    %707 = vmatprep.subr.mxu0 0.0
    %708 = vmatpush1.msra.mxu0 0.0
    %709 = vmatprep.subr.mxu0 0.0
    %710 = vmatpush1.msra.mxu0 0.0
    %711 = vmatprep.subr.mxu0 0.0
    %712 = vmatpush1.msra.mxu0 0.0
    %713 = vmatprep.subr.mxu0 0.0
    %714 = vmatpush1.msra.mxu0 0.0
    %715 = vmatprep.subr.mxu0 0.0
    %716 = vmatpush1.msra.mxu0 0.0
    %717 = vmatprep.subr.mxu0 0.0
    %718 = vmatpush1.msra.mxu0 %v579
    %719 = vmatprep.subr.mxu0 0.0
    %720 = vmatpush2.msra.mxu0 0.0
    %721 = vmatprep.subr.mxu0 0.0
    %722 = vmatpush2.msra.mxu0 0.0
    %723 = vmatprep.subr.mxu0 0.0
    %724 = vmatpush2.msra.mxu0 0.0
    %725 = vmatprep.subr.mxu0 0.0
    %726 = vmatpush2.msra.mxu0 0.0
    %727 = vmatprep.subr.mxu0 0.0
    %728 = vmatpush2.msra.mxu0 0.0
    %729 = vmatprep.subr.mxu0 0.0
    %730 = vmatpush2.msra.mxu0 0.0
    %731 = vmatprep.subr.mxu0 0.0
    %732 = vmatpush2.msra.mxu0 0.0
    %733 = vmatprep.subr.mxu0 0.0
    %734 = vmatpush2.msra.mxu0 0.0
    %735 = vmatprep.subr.mxu0 0.0
    %736 = vmatpush2.msra.mxu0 0.0
    %737 = vmatprep.subr.mxu0 0.0
    %738 = vmatpush2.msra.mxu0 0.0
    %739 = vmatprep.subr.mxu0 0.0
    %740 = vmatpush2.msra.mxu0 0.0
    %741 = vmatprep.subr.mxu0 0.0
    %742 = vmatpush2.msra.mxu0 0.0
    %743 = vmatprep.subr.mxu0 0.0
    %744 = vmatpush2.msra.mxu0 0.0
    %745 = vmatprep.subr.mxu0 0.0
    %746 = vmatpush2.msra.mxu0 0.0
    %747 = vmatprep.subr.mxu0 0.0
    %748 = vmatpush2.msra.mxu0 0.0
    %749 = vmatprep.subr.mxu0 0.0
    %750 = vmatpush2.msra.mxu0 0.0
    %751 = vmatprep.mubr.f32.mxu0 0.0
    %752 = vmatmul.mubr.f32.gmra.mxu0 %v685
    %v753 = vpop.f32.mrf.mxu0
    %v754 = vadd.f32 0.0, %v753
    %v755 = vpop.f32.mrf.mxu0
    %756 = vdwg.mxu0
    %v757 = vmax.f32 %v754, 0.0
    %758 = vset.pattern.permute.xlu0 33
    %759 = vperm.xlu0 %758, %v579
    %v760 = vpop.permute.xlu0 %759
    %v762 = vlaneseq
    %v763 = vshrl.u32 %v762, 7
    %v764 = vsub.s32 1, %v763
    %v765 = vrot.slane %v656, %v764
    %v766 = vadd.f32 %v760, %v765
    %vm767 = vcmp.gt.f32.partialorder %v766, 0.0
    %v768 = vmul.f32 %v766, 0.2
    %v769 = vsel %vm767, %v766, %v768
    %v770 = vadd.f32 %v769, %v501
    %v771 = vsel %vm672, %v770, -inf
    %772 = vmax.xlane.f32.xlu0 %v771
    %v773 = vpop.xlane.xlu0 %772
    %v774 = vsub.f32 %v770, %v773
    %v775 = vmul.f32 %v774, 1.442695
    %v776 = vpow.pop %v775
    %v777 = vsel %vm672, %v776, 0.0
    %778 = vadd.xlane.f32.xlu0 %v777
    %v779 = vpop.xlane.xlu0 %778
    %v780 = vrcp.pop %v779
    %v781 = vmul.f32 %v776, %v780
    %782 = vrot.lane.b32.xlu0 %v579, 120
    %v783 = vpop.permute.xlu0 %782
    %v786 = vsel %vm672, %v781, 0
    %788 = vmatprep.subr.mxu0 0.0
    %789 = vmatpush1.msra.mxu0 0.0
    %790 = vmatprep.subr.mxu0 0.0
    %791 = vmatpush1.msra.mxu0 0.0
    %792 = vmatprep.subr.mxu0 0.0
    %793 = vmatpush1.msra.mxu0 0.0
    %794 = vmatprep.subr.mxu0 0.0
    %795 = vmatpush1.msra.mxu0 0.0
    %796 = vmatprep.subr.mxu0 0.0
    %797 = vmatpush1.msra.mxu0 0.0
    %798 = vmatprep.subr.mxu0 0.0
    %799 = vmatpush1.msra.mxu0 0.0
    %800 = vmatprep.subr.mxu0 0.0
    %801 = vmatpush1.msra.mxu0 0.0
    %802 = vmatprep.subr.mxu0 0.0
    %803 = vmatpush1.msra.mxu0 0.0
    %804 = vmatprep.subr.mxu0 0.0
    %805 = vmatpush1.msra.mxu0 0.0
    %806 = vmatprep.subr.mxu0 0.0
    %807 = vmatpush1.msra.mxu0 0.0
    %808 = vmatprep.subr.mxu0 0.0
    %809 = vmatpush1.msra.mxu0 0.0
    %810 = vmatprep.subr.mxu0 0.0
    %811 = vmatpush1.msra.mxu0 0.0
    %812 = vmatprep.subr.mxu0 0.0
    %813 = vmatpush1.msra.mxu0 0.0
    %814 = vmatprep.subr.mxu0 0.0
    %815 = vmatpush1.msra.mxu0 0.0
    %816 = vmatprep.subr.mxu0 0.0
    %817 = vmatpush1.msra.mxu0 0.0
    %818 = vmatprep.subr.mxu0 0.0
    %819 = vmatpush1.msra.mxu0 %v783
    %820 = vmatprep.subr.mxu0 0.0
    %821 = vmatpush2.msra.mxu0 0.0
    %822 = vmatprep.subr.mxu0 0.0
    %823 = vmatpush2.msra.mxu0 0.0
    %824 = vmatprep.subr.mxu0 0.0
    %825 = vmatpush2.msra.mxu0 0.0
    %826 = vmatprep.subr.mxu0 0.0
    %827 = vmatpush2.msra.mxu0 0.0
    %828 = vmatprep.subr.mxu0 0.0
    %829 = vmatpush2.msra.mxu0 0.0
    %830 = vmatprep.subr.mxu0 0.0
    %831 = vmatpush2.msra.mxu0 0.0
    %832 = vmatprep.subr.mxu0 0.0
    %833 = vmatpush2.msra.mxu0 0.0
    %834 = vmatprep.subr.mxu0 0.0
    %835 = vmatpush2.msra.mxu0 0.0
    %836 = vmatprep.subr.mxu0 0.0
    %837 = vmatpush2.msra.mxu0 0.0
    %838 = vmatprep.subr.mxu0 0.0
    %839 = vmatpush2.msra.mxu0 0.0
    %840 = vmatprep.subr.mxu0 0.0
    %841 = vmatpush2.msra.mxu0 0.0
    %842 = vmatprep.subr.mxu0 0.0
    %843 = vmatpush2.msra.mxu0 0.0
    %844 = vmatprep.subr.mxu0 0.0
    %845 = vmatpush2.msra.mxu0 0.0
    %846 = vmatprep.subr.mxu0 0.0
    %847 = vmatpush2.msra.mxu0 0.0
    %848 = vmatprep.subr.mxu0 0.0
    %849 = vmatpush2.msra.mxu0 0.0
    %850 = vmatprep.subr.mxu0 0.0
    %851 = vmatpush2.msra.mxu0 0.0
    %852 = vmatprep.mubr.f32.mxu0 0.0
    %853 = vmatmul.mubr.f32.gmra.mxu0 %v786
    %v854 = vpop.f32.mrf.mxu0
    %v855 = vadd.f32 0.0, %v854
    %v856 = vpop.f32.mrf.mxu0
    %857 = vdwg.mxu0
    %v858 = vmax.f32 %v855, 0.0
    %v860 = vsel %vm672, %v858, 0
    %862 = vmatprep.subr.mxu0 0.0
    %863 = vmatpush1.msra.mxu0 0.0
    %864 = vmatprep.subr.mxu0 0.0
    %865 = vmatpush1.msra.mxu0 0.0
    %866 = vmatprep.subr.mxu0 0.0
    %867 = vmatpush1.msra.mxu0 0.0
    %868 = vmatprep.subr.mxu0 0.0
    %869 = vmatpush1.msra.mxu0 0.0
    %870 = vmatprep.subr.mxu0 0.0
    %871 = vmatpush1.msra.mxu0 0.0
    %872 = vmatprep.subr.mxu0 0.0
    %873 = vmatpush1.msra.mxu0 0.0
    %874 = vmatprep.subr.mxu0 0.0
    %875 = vmatpush1.msra.mxu0 0.0
    %876 = vmatprep.subr.mxu0 0.0
    %877 = vmatpush1.msra.mxu0 0.0
    %878 = vmatprep.subr.mxu0 0.0
    %879 = vmatpush1.msra.mxu0 0.0
    %880 = vmatprep.subr.mxu0 0.0
    %881 = vmatpush1.msra.mxu0 0.0
    %882 = vmatprep.subr.mxu0 0.0
    %883 = vmatpush1.msra.mxu0 0.0
    %884 = vmatprep.subr.mxu0 0.0
    %885 = vmatpush1.msra.mxu0 0.0
    %886 = vmatprep.subr.mxu0 0.0
    %887 = vmatpush1.msra.mxu0 0.0
    %888 = vmatprep.subr.mxu0 0.0
    %889 = vmatpush1.msra.mxu0 0.0
    %890 = vmatprep.subr.mxu0 0.0
    %891 = vmatpush1.msra.mxu0 0.0
    %892 = vmatprep.subr.mxu0 0.0
    %893 = vmatpush1.msra.mxu0 %v504
    %894 = vmatprep.subr.mxu0 0.0
    %895 = vmatpush2.msra.mxu0 0.0
    %896 = vmatprep.subr.mxu0 0.0
    %897 = vmatpush2.msra.mxu0 0.0
    %898 = vmatprep.subr.mxu0 0.0
    %899 = vmatpush2.msra.mxu0 0.0
    %900 = vmatprep.subr.mxu0 0.0
    %901 = vmatpush2.msra.mxu0 0.0
    %902 = vmatprep.subr.mxu0 0.0
    %903 = vmatpush2.msra.mxu0 0.0
    %904 = vmatprep.subr.mxu0 0.0
    %905 = vmatpush2.msra.mxu0 0.0
    %906 = vmatprep.subr.mxu0 0.0
    %907 = vmatpush2.msra.mxu0 0.0
    %908 = vmatprep.subr.mxu0 0.0
    %909 = vmatpush2.msra.mxu0 0.0
    %910 = vmatprep.subr.mxu0 0.0
    %911 = vmatpush2.msra.mxu0 0.0
    %912 = vmatprep.subr.mxu0 0.0
    %913 = vmatpush2.msra.mxu0 0.0
    %914 = vmatprep.subr.mxu0 0.0
    %915 = vmatpush2.msra.mxu0 0.0
    %916 = vmatprep.subr.mxu0 0.0
    %917 = vmatpush2.msra.mxu0 0.0
    %918 = vmatprep.subr.mxu0 0.0
    %919 = vmatpush2.msra.mxu0 0.0
    %920 = vmatprep.subr.mxu0 0.0
    %921 = vmatpush2.msra.mxu0 0.0
    %922 = vmatprep.subr.mxu0 0.0
    %923 = vmatpush2.msra.mxu0 0.0
    %924 = vmatprep.subr.mxu0 0.0
    %925 = vmatpush2.msra.mxu0 0.0
    %926 = vmatprep.mubr.f32.mxu0 0.0
    %927 = vmatmul.mubr.f32.gmra.mxu0 %v860
    %v928 = vpop.f32.mrf.mxu0
    %v929 = vadd.f32 0.0, %v928
    %v930 = vpop.f32.mrf.mxu0
    %931 = vdwg.mxu0
    %v933 = vsel %vm672, %v757, 0
    %935 = vmatprep.subr.mxu0 0.0
    %936 = vmatpush1.msra.mxu0 0.0
    %937 = vmatprep.subr.mxu0 0.0
    %938 = vmatpush1.msra.mxu0 0.0
    %939 = vmatprep.subr.mxu0 0.0
    %940 = vmatpush1.msra.mxu0 0.0
    %941 = vmatprep.subr.mxu0 0.0
    %942 = vmatpush1.msra.mxu0 0.0
    %943 = vmatprep.subr.mxu0 0.0
    %944 = vmatpush1.msra.mxu0 0.0
    %945 = vmatprep.subr.mxu0 0.0
    %946 = vmatpush1.msra.mxu0 0.0
    %947 = vmatprep.subr.mxu0 0.0
    %948 = vmatpush1.msra.mxu0 0.0
    %949 = vmatprep.subr.mxu0 0.0
    %950 = vmatpush1.msra.mxu0 0.0
    %951 = vmatprep.subr.mxu0 0.0
    %952 = vmatpush1.msra.mxu0 0.0
    %953 = vmatprep.subr.mxu0 0.0
    %954 = vmatpush1.msra.mxu0 0.0
    %955 = vmatprep.subr.mxu0 0.0
    %956 = vmatpush1.msra.mxu0 0.0
    %957 = vmatprep.subr.mxu0 0.0
    %958 = vmatpush1.msra.mxu0 0.0
    %959 = vmatprep.subr.mxu0 0.0
    %960 = vmatpush1.msra.mxu0 0.0
    %961 = vmatprep.subr.mxu0 0.0
    %962 = vmatpush1.msra.mxu0 0.0
    %963 = vmatprep.subr.mxu0 0.0
    %964 = vmatpush1.msra.mxu0 0.0
    %965 = vmatprep.subr.mxu0 0.0
    %966 = vmatpush1.msra.mxu0 %v503
    %967 = vmatprep.subr.mxu0 0.0
    %968 = vmatpush2.msra.mxu0 0.0
    %969 = vmatprep.subr.mxu0 0.0
    %970 = vmatpush2.msra.mxu0 0.0
    %971 = vmatprep.subr.mxu0 0.0
    %972 = vmatpush2.msra.mxu0 0.0
    %973 = vmatprep.subr.mxu0 0.0
    %974 = vmatpush2.msra.mxu0 0.0
    %975 = vmatprep.subr.mxu0 0.0
    %976 = vmatpush2.msra.mxu0 0.0
    %977 = vmatprep.subr.mxu0 0.0
    %978 = vmatpush2.msra.mxu0 0.0
    %979 = vmatprep.subr.mxu0 0.0
    %980 = vmatpush2.msra.mxu0 0.0
    %981 = vmatprep.subr.mxu0 0.0
    %982 = vmatpush2.msra.mxu0 0.0
    %983 = vmatprep.subr.mxu0 0.0
    %984 = vmatpush2.msra.mxu0 0.0
    %985 = vmatprep.subr.mxu0 0.0
    %986 = vmatpush2.msra.mxu0 0.0
    %987 = vmatprep.subr.mxu0 0.0
    %988 = vmatpush2.msra.mxu0 0.0
    %989 = vmatprep.subr.mxu0 0.0
    %990 = vmatpush2.msra.mxu0 0.0
    %991 = vmatprep.subr.mxu0 0.0
    %992 = vmatpush2.msra.mxu0 0.0
    %993 = vmatprep.subr.mxu0 0.0
    %994 = vmatpush2.msra.mxu0 0.0
    %995 = vmatprep.subr.mxu0 0.0
    %996 = vmatpush2.msra.mxu0 0.0
    %997 = vmatprep.subr.mxu0 0.0
    %998 = vmatpush2.msra.mxu0 0.0
    %999 = vmatprep.mubr.f32.mxu0 0.0
    %1000 = vmatmul.mubr.f32.gmra.mxu0 %v933
    %v1001 = vpop.f32.mrf.mxu0
    %v1002 = vadd.f32 %v929, %v1001
    %v1003 = vpop.f32.mrf.mxu0
    %1004 = vdwg.mxu0
    %1005 = vset.pattern.permute.xlu0 34
    %1006 = vperm.xlu0 %1005, %v579
    %v1007 = vpop.permute.xlu0 %1006
    %v1009 = vlaneseq
    %v1010 = vshrl.u32 %v1009, 7
    %v1011 = vsub.s32 2, %v1010
    %v1012 = vrot.slane %v656, %v1011
    %v1013 = vadd.f32 %v1007, %v1012
    %vm1014 = vcmp.gt.f32.partialorder %v1013, 0.0
    %v1015 = vmul.f32 %v1013, 0.2
    %v1016 = vsel %vm1014, %v1013, %v1015
    %v1017 = vadd.f32 %v1016, %v501
    %v1018 = vsel %vm672, %v1017, -inf
    %1019 = vmax.xlane.f32.xlu0 %v1018
    %v1020 = vpop.xlane.xlu0 %1019
    %v1021 = vsub.f32 %v1017, %v1020
    %v1022 = vmul.f32 %v1021, 1.442695
    %v1023 = vpow.pop %v1022
    %v1024 = vsel %vm672, %v1023, 0.0
    %1025 = vadd.xlane.f32.xlu0 %v1024
    %v1026 = vpop.xlane.xlu0 %1025
    %v1027 = vrcp.pop %v1026
    %v1028 = vmul.f32 %v1023, %v1027
    %1029 = vrot.lane.b32.xlu0 %v579, 112
    %v1030 = vpop.permute.xlu0 %1029
    %v1033 = vsel %vm672, %v1028, 0
    %1035 = vmatprep.subr.mxu0 0.0
    %1036 = vmatpush1.msra.mxu0 0.0
    %1037 = vmatprep.subr.mxu0 0.0
    %1038 = vmatpush1.msra.mxu0 0.0
    %1039 = vmatprep.subr.mxu0 0.0
    %1040 = vmatpush1.msra.mxu0 0.0
    %1041 = vmatprep.subr.mxu0 0.0
    %1042 = vmatpush1.msra.mxu0 0.0
    %1043 = vmatprep.subr.mxu0 0.0
    %1044 = vmatpush1.msra.mxu0 0.0
    %1045 = vmatprep.subr.mxu0 0.0
    %1046 = vmatpush1.msra.mxu0 0.0
    %1047 = vmatprep.subr.mxu0 0.0
    %1048 = vmatpush1.msra.mxu0 0.0
    %1049 = vmatprep.subr.mxu0 0.0
    %1050 = vmatpush1.msra.mxu0 0.0
    %1051 = vmatprep.subr.mxu0 0.0
    %1052 = vmatpush1.msra.mxu0 0.0
    %1053 = vmatprep.subr.mxu0 0.0
    %1054 = vmatpush1.msra.mxu0 0.0
    %1055 = vmatprep.subr.mxu0 0.0
    %1056 = vmatpush1.msra.mxu0 0.0
    %1057 = vmatprep.subr.mxu0 0.0
    %1058 = vmatpush1.msra.mxu0 0.0
    %1059 = vmatprep.subr.mxu0 0.0
    %1060 = vmatpush1.msra.mxu0 0.0
    %1061 = vmatprep.subr.mxu0 0.0
    %1062 = vmatpush1.msra.mxu0 0.0
    %1063 = vmatprep.subr.mxu0 0.0
    %1064 = vmatpush1.msra.mxu0 0.0
    %1065 = vmatprep.subr.mxu0 0.0
    %1066 = vmatpush1.msra.mxu0 %v1030
    %1067 = vmatprep.subr.mxu0 0.0
    %1068 = vmatpush2.msra.mxu0 0.0
    %1069 = vmatprep.subr.mxu0 0.0
    %1070 = vmatpush2.msra.mxu0 0.0
    %1071 = vmatprep.subr.mxu0 0.0
    %1072 = vmatpush2.msra.mxu0 0.0
    %1073 = vmatprep.subr.mxu0 0.0
    %1074 = vmatpush2.msra.mxu0 0.0
    %1075 = vmatprep.subr.mxu0 0.0
    %1076 = vmatpush2.msra.mxu0 0.0
    %1077 = vmatprep.subr.mxu0 0.0
    %1078 = vmatpush2.msra.mxu0 0.0
    %1079 = vmatprep.subr.mxu0 0.0
    %1080 = vmatpush2.msra.mxu0 0.0
    %1081 = vmatprep.subr.mxu0 0.0
    %1082 = vmatpush2.msra.mxu0 0.0
    %1083 = vmatprep.subr.mxu0 0.0
    %1084 = vmatpush2.msra.mxu0 0.0
    %1085 = vmatprep.subr.mxu0 0.0
    %1086 = vmatpush2.msra.mxu0 0.0
    %1087 = vmatprep.subr.mxu0 0.0
    %1088 = vmatpush2.msra.mxu0 0.0
    %1089 = vmatprep.subr.mxu0 0.0
    %1090 = vmatpush2.msra.mxu0 0.0
    %1091 = vmatprep.subr.mxu0 0.0
    %1092 = vmatpush2.msra.mxu0 0.0
    %1093 = vmatprep.subr.mxu0 0.0
    %1094 = vmatpush2.msra.mxu0 0.0
    %1095 = vmatprep.subr.mxu0 0.0
    %1096 = vmatpush2.msra.mxu0 0.0
    %1097 = vmatprep.subr.mxu0 0.0
    %1098 = vmatpush2.msra.mxu0 0.0
    %1099 = vmatprep.mubr.f32.mxu0 0.0
    %1100 = vmatmul.mubr.f32.gmra.mxu0 %v1033
    %v1101 = vpop.f32.mrf.mxu0
    %v1102 = vadd.f32 0.0, %v1101
    %v1103 = vpop.f32.mrf.mxu0
    %1104 = vdwg.mxu0
    %v1105 = vmax.f32 %v1102, 0.0
    %v1107 = vsel %vm672, %v1105, 0
    %1109 = vmatprep.subr.mxu0 0.0
    %1110 = vmatpush1.msra.mxu0 0.0
    %1111 = vmatprep.subr.mxu0 0.0
    %1112 = vmatpush1.msra.mxu0 0.0
    %1113 = vmatprep.subr.mxu0 0.0
    %1114 = vmatpush1.msra.mxu0 0.0
    %1115 = vmatprep.subr.mxu0 0.0
    %1116 = vmatpush1.msra.mxu0 0.0
    %1117 = vmatprep.subr.mxu0 0.0
    %1118 = vmatpush1.msra.mxu0 0.0
    %1119 = vmatprep.subr.mxu0 0.0
    %1120 = vmatpush1.msra.mxu0 0.0
    %1121 = vmatprep.subr.mxu0 0.0
    %1122 = vmatpush1.msra.mxu0 0.0
    %1123 = vmatprep.subr.mxu0 0.0
    %1124 = vmatpush1.msra.mxu0 0.0
    %1125 = vmatprep.subr.mxu0 0.0
    %1126 = vmatpush1.msra.mxu0 0.0
    %1127 = vmatprep.subr.mxu0 0.0
    %1128 = vmatpush1.msra.mxu0 0.0
    %1129 = vmatprep.subr.mxu0 0.0
    %1130 = vmatpush1.msra.mxu0 0.0
    %1131 = vmatprep.subr.mxu0 0.0
    %1132 = vmatpush1.msra.mxu0 0.0
    %1133 = vmatprep.subr.mxu0 0.0
    %1134 = vmatpush1.msra.mxu0 0.0
    %1135 = vmatprep.subr.mxu0 0.0
    %1136 = vmatpush1.msra.mxu0 0.0
    %1137 = vmatprep.subr.mxu0 0.0
    %1138 = vmatpush1.msra.mxu0 0.0
    %1139 = vmatprep.subr.mxu0 0.0
    %1140 = vmatpush1.msra.mxu0 %v505
    %1141 = vmatprep.subr.mxu0 0.0
    %1142 = vmatpush2.msra.mxu0 0.0
    %1143 = vmatprep.subr.mxu0 0.0
    %1144 = vmatpush2.msra.mxu0 0.0
    %1145 = vmatprep.subr.mxu0 0.0
    %1146 = vmatpush2.msra.mxu0 0.0
    %1147 = vmatprep.subr.mxu0 0.0
    %1148 = vmatpush2.msra.mxu0 0.0
    %1149 = vmatprep.subr.mxu0 0.0
    %1150 = vmatpush2.msra.mxu0 0.0
    %1151 = vmatprep.subr.mxu0 0.0
    %1152 = vmatpush2.msra.mxu0 0.0
    %1153 = vmatprep.subr.mxu0 0.0
    %1154 = vmatpush2.msra.mxu0 0.0
    %1155 = vmatprep.subr.mxu0 0.0
    %1156 = vmatpush2.msra.mxu0 0.0
    %1157 = vmatprep.subr.mxu0 0.0
    %1158 = vmatpush2.msra.mxu0 0.0
    %1159 = vmatprep.subr.mxu0 0.0
    %1160 = vmatpush2.msra.mxu0 0.0
    %1161 = vmatprep.subr.mxu0 0.0
    %1162 = vmatpush2.msra.mxu0 0.0
    %1163 = vmatprep.subr.mxu0 0.0
    %1164 = vmatpush2.msra.mxu0 0.0
    %1165 = vmatprep.subr.mxu0 0.0
    %1166 = vmatpush2.msra.mxu0 0.0
    %1167 = vmatprep.subr.mxu0 0.0
    %1168 = vmatpush2.msra.mxu0 0.0
    %1169 = vmatprep.subr.mxu0 0.0
    %1170 = vmatpush2.msra.mxu0 0.0
    %1171 = vmatprep.subr.mxu0 0.0
    %1172 = vmatpush2.msra.mxu0 0.0
    %1173 = vmatprep.mubr.f32.mxu0 0.0
    %1174 = vmatmul.mubr.f32.gmra.mxu0 %v1107
    %v1175 = vpop.f32.mrf.mxu0
    %v1176 = vadd.f32 0.0, %v1175
    %v1177 = vpop.f32.mrf.mxu0
    %1178 = vdwg.mxu0
    %v1179 = vadd.f32 %v1002, %v1176
    %1180 = vset.pattern.permute.xlu0 35
    %1181 = vperm.xlu0 %1180, %v579
    %v1182 = vpop.permute.xlu0 %1181
    %v1184 = vlaneseq
    %v1185 = vshrl.u32 %v1184, 7
    %v1186 = vsub.s32 3, %v1185
    %v1187 = vrot.slane %v656, %v1186
    %v1188 = vadd.f32 %v1182, %v1187
    %vm1189 = vcmp.gt.f32.partialorder %v1188, 0.0
    %v1190 = vmul.f32 %v1188, 0.2
    %v1191 = vsel %vm1189, %v1188, %v1190
    %v1192 = vadd.f32 %v1191, %v501
    %v1193 = vsel %vm672, %v1192, -inf
    %1194 = vmax.xlane.f32.xlu0 %v1193
    %v1195 = vpop.xlane.xlu0 %1194
    %v1196 = vsub.f32 %v1192, %v1195
    %v1197 = vmul.f32 %v1196, 1.442695
    %v1198 = vpow.pop %v1197
    %v1199 = vsel %vm672, %v1198, 0.0
    %1200 = vadd.xlane.f32.xlu0 %v1199
    %v1201 = vpop.xlane.xlu0 %1200
    %v1202 = vrcp.pop %v1201
    %v1203 = vmul.f32 %v1198, %v1202
    %1204 = vrot.lane.b32.xlu0 %v579, 104
    %v1205 = vpop.permute.xlu0 %1204
    %v1208 = vsel %vm672, %v1203, 0
    %1210 = vmatprep.subr.mxu0 0.0
    %1211 = vmatpush1.msra.mxu0 0.0
    %1212 = vmatprep.subr.mxu0 0.0
    %1213 = vmatpush1.msra.mxu0 0.0
    %1214 = vmatprep.subr.mxu0 0.0
    %1215 = vmatpush1.msra.mxu0 0.0
    %1216 = vmatprep.subr.mxu0 0.0
    %1217 = vmatpush1.msra.mxu0 0.0
    %1218 = vmatprep.subr.mxu0 0.0
    %1219 = vmatpush1.msra.mxu0 0.0
    %1220 = vmatprep.subr.mxu0 0.0
    %1221 = vmatpush1.msra.mxu0 0.0
    %1222 = vmatprep.subr.mxu0 0.0
    %1223 = vmatpush1.msra.mxu0 0.0
    %1224 = vmatprep.subr.mxu0 0.0
    %1225 = vmatpush1.msra.mxu0 0.0
    %1226 = vmatprep.subr.mxu0 0.0
    %1227 = vmatpush1.msra.mxu0 0.0
    %1228 = vmatprep.subr.mxu0 0.0
    %1229 = vmatpush1.msra.mxu0 0.0
    %1230 = vmatprep.subr.mxu0 0.0
    %1231 = vmatpush1.msra.mxu0 0.0
    %1232 = vmatprep.subr.mxu0 0.0
    %1233 = vmatpush1.msra.mxu0 0.0
    %1234 = vmatprep.subr.mxu0 0.0
    %1235 = vmatpush1.msra.mxu0 0.0
    %1236 = vmatprep.subr.mxu0 0.0
    %1237 = vmatpush1.msra.mxu0 0.0
    %1238 = vmatprep.subr.mxu0 0.0
    %1239 = vmatpush1.msra.mxu0 0.0
    %1240 = vmatprep.subr.mxu0 0.0
    %1241 = vmatpush1.msra.mxu0 %v1205
    %1242 = vmatprep.subr.mxu0 0.0
    %1243 = vmatpush2.msra.mxu0 0.0
    %1244 = vmatprep.subr.mxu0 0.0
    %1245 = vmatpush2.msra.mxu0 0.0
    %1246 = vmatprep.subr.mxu0 0.0
    %1247 = vmatpush2.msra.mxu0 0.0
    %1248 = vmatprep.subr.mxu0 0.0
    %1249 = vmatpush2.msra.mxu0 0.0
    %1250 = vmatprep.subr.mxu0 0.0
    %1251 = vmatpush2.msra.mxu0 0.0
    %1252 = vmatprep.subr.mxu0 0.0
    %1253 = vmatpush2.msra.mxu0 0.0
    %1254 = vmatprep.subr.mxu0 0.0
    %1255 = vmatpush2.msra.mxu0 0.0
    %1256 = vmatprep.subr.mxu0 0.0
    %1257 = vmatpush2.msra.mxu0 0.0
    %1258 = vmatprep.subr.mxu0 0.0
    %1259 = vmatpush2.msra.mxu0 0.0
    %1260 = vmatprep.subr.mxu0 0.0
    %1261 = vmatpush2.msra.mxu0 0.0
    %1262 = vmatprep.subr.mxu0 0.0
    %1263 = vmatpush2.msra.mxu0 0.0
    %1264 = vmatprep.subr.mxu0 0.0
    %1265 = vmatpush2.msra.mxu0 0.0
    %1266 = vmatprep.subr.mxu0 0.0
    %1267 = vmatpush2.msra.mxu0 0.0
    %1268 = vmatprep.subr.mxu0 0.0
    %1269 = vmatpush2.msra.mxu0 0.0
    %1270 = vmatprep.subr.mxu0 0.0
    %1271 = vmatpush2.msra.mxu0 0.0
    %1272 = vmatprep.subr.mxu0 0.0
    %1273 = vmatpush2.msra.mxu0 0.0
    %1274 = vmatprep.mubr.f32.mxu0 0.0
    %1275 = vmatmul.mubr.f32.gmra.mxu0 %v1208
    %v1276 = vpop.f32.mrf.mxu0
    %v1277 = vadd.f32 0.0, %v1276
    %v1278 = vpop.f32.mrf.mxu0
    %1279 = vdwg.mxu0
    %v1280 = vmax.f32 %v1277, 0.0
    %v1282 = vsel %vm672, %v1280, 0
    %1284 = vmatprep.subr.mxu0 0.0
    %1285 = vmatpush1.msra.mxu0 0.0
    %1286 = vmatprep.subr.mxu0 0.0
    %1287 = vmatpush1.msra.mxu0 0.0
    %1288 = vmatprep.subr.mxu0 0.0
    %1289 = vmatpush1.msra.mxu0 0.0
    %1290 = vmatprep.subr.mxu0 0.0
    %1291 = vmatpush1.msra.mxu0 0.0
    %1292 = vmatprep.subr.mxu0 0.0
    %1293 = vmatpush1.msra.mxu0 0.0
    %1294 = vmatprep.subr.mxu0 0.0
    %1295 = vmatpush1.msra.mxu0 0.0
    %1296 = vmatprep.subr.mxu0 0.0
    %1297 = vmatpush1.msra.mxu0 0.0
    %1298 = vmatprep.subr.mxu0 0.0
    %1299 = vmatpush1.msra.mxu0 0.0
    %1300 = vmatprep.subr.mxu0 0.0
    %1301 = vmatpush1.msra.mxu0 0.0
    %1302 = vmatprep.subr.mxu0 0.0
    %1303 = vmatpush1.msra.mxu0 0.0
    %1304 = vmatprep.subr.mxu0 0.0
    %1305 = vmatpush1.msra.mxu0 0.0
    %1306 = vmatprep.subr.mxu0 0.0
    %1307 = vmatpush1.msra.mxu0 0.0
    %1308 = vmatprep.subr.mxu0 0.0
    %1309 = vmatpush1.msra.mxu0 0.0
    %1310 = vmatprep.subr.mxu0 0.0
    %1311 = vmatpush1.msra.mxu0 0.0
    %1312 = vmatprep.subr.mxu0 0.0
    %1313 = vmatpush1.msra.mxu0 0.0
    %1314 = vmatprep.subr.mxu0 0.0
    %1315 = vmatpush1.msra.mxu0 %v506
    %1316 = vmatprep.subr.mxu0 0.0
    %1317 = vmatpush2.msra.mxu0 0.0
    %1318 = vmatprep.subr.mxu0 0.0
    %1319 = vmatpush2.msra.mxu0 0.0
    %1320 = vmatprep.subr.mxu0 0.0
    %1321 = vmatpush2.msra.mxu0 0.0
    %1322 = vmatprep.subr.mxu0 0.0
    %1323 = vmatpush2.msra.mxu0 0.0
    %1324 = vmatprep.subr.mxu0 0.0
    %1325 = vmatpush2.msra.mxu0 0.0
    %1326 = vmatprep.subr.mxu0 0.0
    %1327 = vmatpush2.msra.mxu0 0.0
    %1328 = vmatprep.subr.mxu0 0.0
    %1329 = vmatpush2.msra.mxu0 0.0
    %1330 = vmatprep.subr.mxu0 0.0
    %1331 = vmatpush2.msra.mxu0 0.0
    %1332 = vmatprep.subr.mxu0 0.0
    %1333 = vmatpush2.msra.mxu0 0.0
    %1334 = vmatprep.subr.mxu0 0.0
    %1335 = vmatpush2.msra.mxu0 0.0
    %1336 = vmatprep.subr.mxu0 0.0
    %1337 = vmatpush2.msra.mxu0 0.0
    %1338 = vmatprep.subr.mxu0 0.0
    %1339 = vmatpush2.msra.mxu0 0.0
    %1340 = vmatprep.subr.mxu0 0.0
    %1341 = vmatpush2.msra.mxu0 0.0
    %1342 = vmatprep.subr.mxu0 0.0
    %1343 = vmatpush2.msra.mxu0 0.0
    %1344 = vmatprep.subr.mxu0 0.0
    %1345 = vmatpush2.msra.mxu0 0.0
    %1346 = vmatprep.subr.mxu0 0.0
    %1347 = vmatpush2.msra.mxu0 0.0
    %1348 = vmatprep.mubr.f32.mxu0 0.0
    %1349 = vmatmul.mubr.f32.gmra.mxu0 %v1282
    %v1350 = vpop.f32.mrf.mxu0
    %v1351 = vadd.f32 0.0, %v1350
    %v1352 = vpop.f32.mrf.mxu0
    %1353 = vdwg.mxu0
    %v1354 = vadd.f32 %v1179, %v1351
    %v1355 = vrot.slane %v502, 4
    %v1356 = vsel %vm672, %v1355, 0
    %v1359 = vsel %vm672, %v1354, 0
    %1361 = vmatprep.subr.mxu0 0.0
    %1362 = vmatpush1.xpose.msra.mxu0 0.0
    %1363 = vmatprep.subr.mxu0 0.0
    %1364 = vmatpush1.xpose.msra.mxu0 0.0
    %1365 = vmatprep.subr.mxu0 0.0
    %1366 = vmatpush1.xpose.msra.mxu0 0.0
    %1367 = vmatprep.subr.mxu0 0.0
    %1368 = vmatpush1.xpose.msra.mxu0 0.0
    %1369 = vmatprep.subr.mxu0 0.0
    %1370 = vmatpush1.xpose.msra.mxu0 0.0
    %1371 = vmatprep.subr.mxu0 0.0
    %1372 = vmatpush1.xpose.msra.mxu0 0.0
    %1373 = vmatprep.subr.mxu0 0.0
    %1374 = vmatpush1.xpose.msra.mxu0 0.0
    %1375 = vmatprep.subr.mxu0 0.0
    %1376 = vmatpush1.xpose.msra.mxu0 0.0
    %1377 = vmatprep.subr.mxu0 0.0
    %1378 = vmatpush1.xpose.msra.mxu0 0.0
    %1379 = vmatprep.subr.mxu0 0.0
    %1380 = vmatpush1.xpose.msra.mxu0 0.0
    %1381 = vmatprep.subr.mxu0 0.0
    %1382 = vmatpush1.xpose.msra.mxu0 0.0
    %1383 = vmatprep.subr.mxu0 0.0
    %1384 = vmatpush1.xpose.msra.mxu0 0.0
    %1385 = vmatprep.subr.mxu0 0.0
    %1386 = vmatpush1.xpose.msra.mxu0 0.0
    %1387 = vmatprep.subr.mxu0 0.0
    %1388 = vmatpush1.xpose.msra.mxu0 0.0
    %1389 = vmatprep.subr.mxu0 0.0
    %1390 = vmatpush1.xpose.msra.mxu0 0.0
    %1391 = vmatprep.subr.mxu0 0.0
    %1392 = vmatpush1.xpose.msra.mxu0 %v1359
    %1393 = vmatprep.subr.mxu0 0.0
    %1394 = vmatpush2.xpose.msra.mxu0 0.0
    %1395 = vmatprep.subr.mxu0 0.0
    %1396 = vmatpush2.xpose.msra.mxu0 0.0
    %1397 = vmatprep.subr.mxu0 0.0
    %1398 = vmatpush2.xpose.msra.mxu0 0.0
    %1399 = vmatprep.subr.mxu0 0.0
    %1400 = vmatpush2.xpose.msra.mxu0 0.0
    %1401 = vmatprep.subr.mxu0 0.0
    %1402 = vmatpush2.xpose.msra.mxu0 0.0
    %1403 = vmatprep.subr.mxu0 0.0
    %1404 = vmatpush2.xpose.msra.mxu0 0.0
    %1405 = vmatprep.subr.mxu0 0.0
    %1406 = vmatpush2.xpose.msra.mxu0 0.0
    %1407 = vmatprep.subr.mxu0 0.0
    %1408 = vmatpush2.xpose.msra.mxu0 0.0
    %1409 = vmatprep.subr.mxu0 0.0
    %1410 = vmatpush2.xpose.msra.mxu0 0.0
    %1411 = vmatprep.subr.mxu0 0.0
    %1412 = vmatpush2.xpose.msra.mxu0 0.0
    %1413 = vmatprep.subr.mxu0 0.0
    %1414 = vmatpush2.xpose.msra.mxu0 0.0
    %1415 = vmatprep.subr.mxu0 0.0
    %1416 = vmatpush2.xpose.msra.mxu0 0.0
    %1417 = vmatprep.subr.mxu0 0.0
    %1418 = vmatpush2.xpose.msra.mxu0 0.0
    %1419 = vmatprep.subr.mxu0 0.0
    %1420 = vmatpush2.xpose.msra.mxu0 0.0
    %1421 = vmatprep.subr.mxu0 0.0
    %1422 = vmatpush2.xpose.msra.mxu0 0.0
    %1423 = vmatprep.subr.mxu0 0.0
    %1424 = vmatpush2.xpose.msra.mxu0 0.0
    %1425 = vmatprep.mubr.f32.mxu0 0.0
    %1426 = vmatmul.mubr.f32.gmra.mxu0 %v1356
    %v1427 = vpop.f32.mrf.mxu0
    %v1428 = vadd.f32 0.0, %v1427
    %v1429 = vpop.f32.mrf.mxu0
    %1430 = vdwg.mxu0
    %1431 = vset.pattern.permute.xlu0 8
    %1432 = vperm.xlu0 %1431, %v1354
    %v1433 = vpop.permute.xlu0 %1432
    %v1435 = vlaneseq
    %v1436 = vshrl.u32 %v1435, 7
    %v1437 = vsub.s32 0, %v1436
    %v1438 = vrot.slane %v1428, %v1437
    %v1439 = vadd.f32 %v1433, %v1438
    %vm1440 = vcmp.gt.f32.partialorder %v1439, 0.0
    %v1441 = vmul.f32 %v1439, 0.2
    %v1442 = vsel %vm1440, %v1439, %v1441
    %v1443 = vadd.f32 %v1442, %v501
    %v1444 = vsel %vm672, %v1443, -inf
    %1445 = vmax.xlane.f32.xlu0 %v1444
    %v1446 = vpop.xlane.xlu0 %1445
    %v1447 = vsub.f32 %v1443, %v1446
    %v1448 = vmul.f32 %v1447, 1.442695
    %v1449 = vpow.pop %v1448
    %v1450 = vsel %vm672, %v1449, 0.0
    %1451 = vadd.xlane.f32.xlu0 %v1450
    %v1452 = vpop.xlane.xlu0 %1451
    %v1453 = vrcp.pop %v1452
    %v1454 = vmul.f32 %v1449, %v1453
    %v1456 = vsel %vm672, %v1454, 0
    %1458 = vmatprep.subr.mxu0 0.0
    %1459 = vmatpush1.msra.mxu0 0.0
    %1460 = vmatprep.subr.mxu0 0.0
    %1461 = vmatpush1.msra.mxu0 0.0
    %1462 = vmatprep.subr.mxu0 0.0
    %1463 = vmatpush1.msra.mxu0 0.0
    %1464 = vmatprep.subr.mxu0 0.0
    %1465 = vmatpush1.msra.mxu0 0.0
    %1466 = vmatprep.subr.mxu0 0.0
    %1467 = vmatpush1.msra.mxu0 0.0
    %1468 = vmatprep.subr.mxu0 0.0
    %1469 = vmatpush1.msra.mxu0 0.0
    %1470 = vmatprep.subr.mxu0 0.0
    %1471 = vmatpush1.msra.mxu0 0.0
    %1472 = vmatprep.subr.mxu0 0.0
    %1473 = vmatpush1.msra.mxu0 0.0
    %1474 = vmatprep.subr.mxu0 0.0
    %1475 = vmatpush1.msra.mxu0 0.0
    %1476 = vmatprep.subr.mxu0 0.0
    %1477 = vmatpush1.msra.mxu0 0.0
    %1478 = vmatprep.subr.mxu0 0.0
    %1479 = vmatpush1.msra.mxu0 0.0
    %1480 = vmatprep.subr.mxu0 0.0
    %1481 = vmatpush1.msra.mxu0 0.0
    %1482 = vmatprep.subr.mxu0 0.0
    %1483 = vmatpush1.msra.mxu0 0.0
    %1484 = vmatprep.subr.mxu0 0.0
    %1485 = vmatpush1.msra.mxu0 0.0
    %1486 = vmatprep.subr.mxu0 0.0
    %1487 = vmatpush1.msra.mxu0 0.0
    %1488 = vmatprep.subr.mxu0 0.0
    %1489 = vmatpush1.msra.mxu0 %v1354
    %1490 = vmatprep.subr.mxu0 0.0
    %1491 = vmatpush2.msra.mxu0 0.0
    %1492 = vmatprep.subr.mxu0 0.0
    %1493 = vmatpush2.msra.mxu0 0.0
    %1494 = vmatprep.subr.mxu0 0.0
    %1495 = vmatpush2.msra.mxu0 0.0
    %1496 = vmatprep.subr.mxu0 0.0
    %1497 = vmatpush2.msra.mxu0 0.0
    %1498 = vmatprep.subr.mxu0 0.0
    %1499 = vmatpush2.msra.mxu0 0.0
    %1500 = vmatprep.subr.mxu0 0.0
    %1501 = vmatpush2.msra.mxu0 0.0
    %1502 = vmatprep.subr.mxu0 0.0
    %1503 = vmatpush2.msra.mxu0 0.0
    %1504 = vmatprep.subr.mxu0 0.0
    %1505 = vmatpush2.msra.mxu0 0.0
    %1506 = vmatprep.subr.mxu0 0.0
    %1507 = vmatpush2.msra.mxu0 0.0
    %1508 = vmatprep.subr.mxu0 0.0
    %1509 = vmatpush2.msra.mxu0 0.0
    %1510 = vmatprep.subr.mxu0 0.0
    %1511 = vmatpush2.msra.mxu0 0.0
    %1512 = vmatprep.subr.mxu0 0.0
    %1513 = vmatpush2.msra.mxu0 0.0
    %1514 = vmatprep.subr.mxu0 0.0
    %1515 = vmatpush2.msra.mxu0 0.0
    %1516 = vmatprep.subr.mxu0 0.0
    %1517 = vmatpush2.msra.mxu0 0.0
    %1518 = vmatprep.subr.mxu0 0.0
    %1519 = vmatpush2.msra.mxu0 0.0
    %1520 = vmatprep.subr.mxu0 0.0
    %1521 = vmatpush2.msra.mxu0 0.0
    %1522 = vmatprep.mubr.f32.mxu0 0.0
    %1523 = vmatmul.mubr.f32.gmra.mxu0 %v1456
    %v1524 = vpop.f32.mrf.mxu0
    %v1525 = vadd.f32 0.0, %v1524
    %v1526 = vpop.f32.mrf.mxu0
    %1527 = vdwg.mxu0
    %1528 = vst.msk [vmem:[#allocation11] sm:$0xff] %vm672, %v1525
    // Predicated region
    $region66: #{spatio_temporal_forward.1} parent=1 // pred_check
      _
    $region67: #{spatio_temporal_forward.1} parent=1 // pred_check_branch
      %1530 = sbr.rel (0) target = $region69
    $region68: #{spatio_temporal_forward.1} parent=1 // pred_region
      %s1532 = ssub.s32 256, 256
      %1533 = vsyncadd [#allocation4], %s1532
      %s1534 = sshll.u32 [#allocation10], 4
      %s1535 = int_to_ptr.vmem [resolvable:$true] %s1534
      %1540 = dma.vmem_to_hbm [thread:$0]  %s1535, 256, %s12, [#allocation4], 128, 128, 8
    $region69: #{spatio_temporal_forward.1} parent=1 // pred_fallthru
      _
    // Predicated region
    $region70: #{spatio_temporal_forward.1} parent=1 // pred_check
      _
    $region71: #{spatio_temporal_forward.1} parent=1 // pred_check_branch
      %1542 = sbr.rel (0) target = $region73
    $region72: #{spatio_temporal_forward.1} parent=1 // pred_region
      %s1544 = ssub.s32 128, 128
      %1545 = vsyncadd [#allocation12], %s1544
      %s1547 = sshll.u32 [#allocation11], 4
      %s1548 = int_to_ptr.vmem [resolvable:$true] %s1547
      %1550 = dma.vmem_to_hbm [thread:$0]  %s1548, 128, %s13, [#allocation12]
    $region73: #{spatio_temporal_forward.1} parent=1 // pred_fallthru
      _
    // Predicated region
    $region74: #{spatio_temporal_forward.1} parent=1 // pred_check
      _
    $region75: #{spatio_temporal_forward.1} parent=1 // pred_check_branch
      %1552 = sbr.rel (0) target = $region77
    $region76: #{spatio_temporal_forward.1} parent=1 // pred_region
      %1553 = dma.done [#allocation4], 256
    $region77: #{spatio_temporal_forward.1} parent=1 // pred_fallthru
      _
    // Predicated region
    $region78: #{spatio_temporal_forward.1} parent=1 // pred_check
      _
    $region79: #{spatio_temporal_forward.1} parent=1 // pred_check_branch
      %1555 = sbr.rel (0) target = $region81
    $region80: #{spatio_temporal_forward.1} parent=1 // pred_region
      %1556 = dma.done [#allocation12], 128
    $region81: #{spatio_temporal_forward.1} parent=1 // pred_fallthru
      _
    %1557 = vsyncpa [#allocation3], 1
    %1558 = vsyncpa [#allocation6], 1
    %1559 = vsyncpa [#allocation9], 1
    %1560 = vsyncpa [#allocation4], 1
    %1561 = vsyncpa [#allocation12], 1

</llo_original>
